<compile_context>
chip_gen: v7x
topology: tpu7x:2x2x1
jax: 0.10.0
libtpu: 0.0.40
codegen_flags: <defaults>
</compile_context>

<pallas_src>
import functools

import jax
import jax.numpy as jnp
from jax.experimental import pallas as pl
from jax.experimental.pallas import tpu as pltpu

INPUT_SIZE = 2800
FC1_OUT = 256
HIDDEN_SIZE = 128
NUM_CLASSES = 7

OUT_PAD = 128   # classifier head padded 7 -> 128 lanes (lane-dense stores)
TB_MAX = 512    # max batch rows per tile (x tile: 512 x 2800 f32 ~= 5.5 MiB/buffer)


def mlp_kernel(x_ref, w1_ref, b1_ref, w2_ref, b2_ref, w3_ref, b3_ref, o_ref):
    # Fused fc1 -> ReLU -> fc2 -> ReLU -> fc3 for one (TB, INPUT_SIZE) batch tile.
    # f32 x is cast to bf16 in VMEM (MXU-native operands); accumulation stays f32.
    x = x_ref[...].astype(jnp.bfloat16)
    h1 = jnp.dot(x, w1_ref[...], preferred_element_type=jnp.float32) + b1_ref[...]
    h1 = jnp.maximum(h1, 0.0).astype(jnp.bfloat16)
    h2 = jnp.dot(h1, w2_ref[...], preferred_element_type=jnp.float32) + b2_ref[...]
    h2 = jnp.maximum(h2, 0.0).astype(jnp.bfloat16)
    out = jnp.dot(h2, w3_ref[...], preferred_element_type=jnp.float32) + b3_ref[...]
    o_ref[...] = out.astype(o_ref.dtype)


def _round_up(v, m):
    return -(-v // m) * m


def _choose_tb(batch):
    # <=512-row tiles; prefer >= 2 tiles so the "parallel" batch axis can shard
    # across both TensorCores on v7x. Rows per tile stay a multiple of 8 (f32 sublane).
    if batch <= 8:
        return 8
    if batch <= 2 * TB_MAX:
        return _round_up(_round_up(batch, 2) // 2, 8)
    return TB_MAX


def prepare_params(w1, b1, w2, b2, w3, b3):
    """One-time parameter prep (hoisted out of the per-call wrapper):
    bf16 matmul operands, classifier head padded 7 -> 128 output lanes.
    Weights are pre-transposed (in_features, out_features); biases (1, out)."""
    w3p = jnp.pad(w3, ((0, 0), (0, OUT_PAD - w3.shape[1])))
    b3p = jnp.pad(b3, ((0, 0), (0, OUT_PAD - b3.shape[1])))
    return (w1.astype(jnp.bfloat16), b1.astype(jnp.float32),
            w2.astype(jnp.bfloat16), b2.astype(jnp.float32),
            w3p.astype(jnp.bfloat16), b3p.astype(jnp.float32))


def mlp_classifier2(x, w1, b1, w2, b2, w3, b3):
    """x: (B, INPUT_SIZE) f32. Params as returned by prepare_params()."""
    B = x.shape[0]
    tb = _choose_tb(B)
    Bp = _round_up(B, tb)
    if Bp != B:
        x = jnp.pad(x, ((0, Bp - B), (0, 0)))

    flops = 2 * Bp * (INPUT_SIZE * FC1_OUT + FC1_OUT * HIDDEN_SIZE + HIDDEN_SIZE * OUT_PAD)
    bytes_accessed = (
        4 * Bp * INPUT_SIZE                      # f32 x stream (dominant HBM traffic)
        + 2 * (w1.size + w2.size + w3.size)      # bf16 weights, DMA'd once (resident)
        + 4 * (b1.size + b2.size + b3.size)      # f32 biases
        + 2 * Bp * OUT_PAD                       # bf16 output writeback
    )

    out = pl.pallas_call(
        mlp_kernel,
        out_shape=jax.ShapeDtypeStruct((Bp, OUT_PAD), jnp.bfloat16),
        grid_spec=pltpu.PrefetchScalarGridSpec(
            num_scalar_prefetch=0,
            grid=(Bp // tb,),
            in_specs=[
                # x: tiled over batch; full-K block (== array dim, so the 128-lane
                # divisibility rule doesn't apply). Streamed f32, cast in-kernel.
                pl.BlockSpec((tb, INPUT_SIZE), lambda i: (i, 0)),
                # Weights/biases: constant index_map -> DMA'd once, stay resident
                # in VMEM across all batch tiles (no per-step re-fetch).
                pl.BlockSpec((INPUT_SIZE, FC1_OUT), lambda i: (0, 0)),
                pl.BlockSpec((1, FC1_OUT), lambda i: (0, 0)),
                pl.BlockSpec((FC1_OUT, HIDDEN_SIZE), lambda i: (0, 0)),
                pl.BlockSpec((1, HIDDEN_SIZE), lambda i: (0, 0)),
                pl.BlockSpec((HIDDEN_SIZE, OUT_PAD), lambda i: (0, 0)),
                pl.BlockSpec((1, OUT_PAD), lambda i: (0, 0)),
            ],
            out_specs=pl.BlockSpec((tb, OUT_PAD), lambda i: (i, 0)),
        ),
        compiler_params=pltpu.CompilerParams(
            dimension_semantics=("parallel",),   # batch tiles shard across TCs (v7x)
            vmem_limit_bytes=32 * 1024 * 1024,   # ~16 MiB used at tb=512; fits v7x 64 MiB
        ),
        cost_estimate=pl.CostEstimate(
            flops=flops, transcendentals=0, bytes_accessed=bytes_accessed
        ),
    )(x, w1, b1, w2, b2, w3, b3)

    return out[:B, :NUM_CLASSES].astype(jnp.float32)


def init_params(key):
    # Deterministic synthetic init (PyTorch-style uniform(-1/sqrt(fan_in), 1/sqrt(fan_in))).
    ks = jax.random.split(key, 6)

    def lin(kw, kb, fan_in, fan_out):
        bound = 1.0 / jnp.sqrt(fan_in)
        w = jax.random.uniform(kw, (fan_in, fan_out), jnp.float32, -bound, bound)
        b = jax.random.uniform(kb, (1, fan_out), jnp.float32, -bound, bound)
        return w, b

    w1, b1 = lin(ks[0], ks[1], INPUT_SIZE, FC1_OUT)
    w2, b2 = lin(ks[2], ks[3], FC1_OUT, HIDDEN_SIZE)
    w3, b3 = lin(ks[4], ks[5], HIDDEN_SIZE, NUM_CLASSES)
    return w1, b1, w2, b2, w3, b3


def mlp_ref(x, w1, b1, w2, b2, w3, b3):
    # Pure-JAX reference mirroring the kernel's bf16 operand rounding (f32 accumulation).
    bf = lambda a: a.astype(jnp.bfloat16).astype(jnp.float32)
    h1 = jnp.maximum(bf(x) @ bf(w1) + b1, 0.0)
    h2 = jnp.maximum(bf(h1) @ bf(w2) + b2, 0.0)
    return bf(h2) @ bf(w3) + b3


if __name__ == "__main__":
    key = jax.random.PRNGKey(0)
    kx, kp = jax.random.split(key)
    batch = 8
    x = jax.random.normal(kx, (batch, INPUT_SIZE), jnp.float32)

    raw_params = init_params(kp)
    params = prepare_params(*raw_params)   # one-time pad + bf16 cast (not per call)

    fwd = jax.jit(lambda xb: mlp_classifier2(xb, *params))
    out = jax.block_until_ready(fwd(x))
    assert out.shape == (batch, NUM_CLASSES)

    ref = mlp_ref(x, *raw_params)
    assert jnp.allclose(out, ref, atol=2e-2, rtol=2e-2), "mismatch vs JAX reference"
    print("KERNEL_OK")
</pallas_src>

<mosaic_0001>
module attributes {stable_mosaic.version = 11 : i64} {
  func.func @mlp_kernel(%arg0: i32, %arg1: memref<8x2800xf32, #tpu.memory_space<vmem>>, %arg2: memref<2800x256xbf16, #tpu.memory_space<vmem>>, %arg3: memref<1x256xf32, #tpu.memory_space<vmem>>, %arg4: memref<256x128xbf16, #tpu.memory_space<vmem>>, %arg5: memref<1x128xf32, #tpu.memory_space<vmem>>, %arg6: memref<128x128xbf16, #tpu.memory_space<vmem>>, %arg7: memref<1x128xf32, #tpu.memory_space<vmem>>, %arg8: memref<8x128xbf16, #tpu.memory_space<vmem>>) attributes {dimension_semantics = [#tpu.dimension_semantics<parallel>], iteration_bounds = array<i64: 1>, scalar_prefetch = 0 : i64, scratch_operands = 0 : i64, tpu.core_type = #tpu.core_type<tc>, window_params = [{transform_indices = @transform_0, window_bounds = array<i64: 8, 2800>}, {pipeline_mode = #tpu.pipeline_mode<synchronous>, transform_indices = @transform_1, window_bounds = array<i64: 2800, 256>}, {pipeline_mode = #tpu.pipeline_mode<synchronous>, transform_indices = @transform_2, window_bounds = array<i64: 1, 256>}, {pipeline_mode = #tpu.pipeline_mode<synchronous>, transform_indices = @transform_3, window_bounds = array<i64: 256, 128>}, {pipeline_mode = #tpu.pipeline_mode<synchronous>, transform_indices = @transform_4, window_bounds = array<i64: 1, 128>}, {pipeline_mode = #tpu.pipeline_mode<synchronous>, transform_indices = @transform_5, window_bounds = array<i64: 128, 128>}, {pipeline_mode = #tpu.pipeline_mode<synchronous>, transform_indices = @transform_6, window_bounds = array<i64: 1, 128>}, {transform_indices = @transform_7, window_bounds = array<i64: 8, 128>}]} {
    %c0 = arith.constant 0 : index
    %c0_0 = arith.constant 0 : index
    %0 = vector.load %arg1[%c0, %c0_0] : memref<8x2800xf32, #tpu.memory_space<vmem>>, vector<8x2800xf32>
    %1 = arith.truncf %0 : vector<8x2800xf32> to vector<8x2800xbf16>
    %c0_1 = arith.constant 0 : index
    %c0_2 = arith.constant 0 : index
    %2 = vector.load %arg2[%c0_1, %c0_2] : memref<2800x256xbf16, #tpu.memory_space<vmem>>, vector<2800x256xbf16>
    %cst = arith.constant dense<0.000000e+00> : vector<8x256xf32>
    %3 = tpu.matmul %1, %2, %cst {dimension_numbers = #tpu.dot_dimension_numbers<[1], [0], [0], [1], [0, 0, 1, 1], [], []>} : vector<8x2800xbf16>, vector<2800x256xbf16>, vector<8x256xf32> -> vector<8x256xf32>
    %c0_3 = arith.constant 0 : index
    %c0_4 = arith.constant 0 : index
    %4 = vector.load %arg3[%c0_3, %c0_4] : memref<1x256xf32, #tpu.memory_space<vmem>>, vector<1x256xf32>
    %5 = vector.broadcast %4 : vector<1x256xf32> to vector<8x256xf32>
    %6 = arith.addf %3, %5 : vector<8x256xf32>
    %cst_5 = arith.constant 0.000000e+00 : f32
    %7 = vector.broadcast %cst_5 : f32 to vector<8x256xf32>
    %8 = arith.maximumf %6, %7 : vector<8x256xf32>
    %9 = arith.truncf %8 : vector<8x256xf32> to vector<8x256xbf16>
    %c0_6 = arith.constant 0 : index
    %c0_7 = arith.constant 0 : index
    %10 = vector.load %arg4[%c0_6, %c0_7] : memref<256x128xbf16, #tpu.memory_space<vmem>>, vector<256x128xbf16>
    %cst_8 = arith.constant dense<0.000000e+00> : vector<8x128xf32>
    %11 = tpu.matmul %9, %10, %cst_8 {dimension_numbers = #tpu.dot_dimension_numbers<[1], [0], [0], [1], [0, 0, 1, 1], [], []>} : vector<8x256xbf16>, vector<256x128xbf16>, vector<8x128xf32> -> vector<8x128xf32>
    %c0_9 = arith.constant 0 : index
    %c0_10 = arith.constant 0 : index
    %12 = vector.load %arg5[%c0_9, %c0_10] : memref<1x128xf32, #tpu.memory_space<vmem>>, vector<1x128xf32>
    %13 = vector.broadcast %12 : vector<1x128xf32> to vector<8x128xf32>
    %14 = arith.addf %11, %13 : vector<8x128xf32>
    %cst_11 = arith.constant 0.000000e+00 : f32
    %15 = vector.broadcast %cst_11 : f32 to vector<8x128xf32>
    %16 = arith.maximumf %14, %15 : vector<8x128xf32>
    %17 = arith.truncf %16 : vector<8x128xf32> to vector<8x128xbf16>
    %c0_12 = arith.constant 0 : index
    %c0_13 = arith.constant 0 : index
    %18 = vector.load %arg6[%c0_12, %c0_13] : memref<128x128xbf16, #tpu.memory_space<vmem>>, vector<128x128xbf16>
    %cst_14 = arith.constant dense<0.000000e+00> : vector<8x128xf32>
    %19 = tpu.matmul %17, %18, %cst_14 {dimension_numbers = #tpu.dot_dimension_numbers<[1], [0], [0], [1], [0, 0, 1, 1], [], []>} : vector<8x128xbf16>, vector<128x128xbf16>, vector<8x128xf32> -> vector<8x128xf32>
    %c0_15 = arith.constant 0 : index
    %c0_16 = arith.constant 0 : index
    %20 = vector.load %arg7[%c0_15, %c0_16] : memref<1x128xf32, #tpu.memory_space<vmem>>, vector<1x128xf32>
    %21 = vector.broadcast %20 : vector<1x128xf32> to vector<8x128xf32>
    %22 = arith.addf %19, %21 : vector<8x128xf32>
    %23 = arith.truncf %22 : vector<8x128xf32> to vector<8x128xbf16>
    %c0_17 = arith.constant 0 : index
    %c0_18 = arith.constant 0 : index
    %24 = vector.load %arg8[%c0_17, %c0_18] : memref<8x128xbf16, #tpu.memory_space<vmem>>, vector<8x128xbf16>
    tpu.vector_store %arg8[%c0_17, %c0_18], %23 {strides = array<i32>} : memref<8x128xbf16, #tpu.memory_space<vmem>>, vector<8x128xbf16>,
    return
  }
  func.func @transform_0(%arg0: i32) -> (i32, i32) {
    %c0_i32 = arith.constant 0 : i32
    %c0_i32_0 = arith.constant 0 : i32
    return %arg0, %c0_i32 : i32, i32
  }
  func.func @transform_1(%arg0: i32) -> (i32, i32) {
    %c0_i32 = arith.constant 0 : i32
    %c0_i32_0 = arith.constant 0 : i32
    %c0_i32_1 = arith.constant 0 : i32
    return %c0_i32, %c0_i32_0 : i32, i32
  }
  func.func @transform_2(%arg0: i32) -> (i32, i32) {
    %c0_i32 = arith.constant 0 : i32
    %c0_i32_0 = arith.constant 0 : i32
    %c0_i32_1 = arith.constant 0 : i32
    return %c0_i32, %c0_i32_0 : i32, i32
  }
  func.func @transform_3(%arg0: i32) -> (i32, i32) {
    %c0_i32 = arith.constant 0 : i32
    %c0_i32_0 = arith.constant 0 : i32
    %c0_i32_1 = arith.constant 0 : i32
    return %c0_i32, %c0_i32_0 : i32, i32
  }
  func.func @transform_4(%arg0: i32) -> (i32, i32) {
    %c0_i32 = arith.constant 0 : i32
    %c0_i32_0 = arith.constant 0 : i32
    %c0_i32_1 = arith.constant 0 : i32
    return %c0_i32, %c0_i32_0 : i32, i32
  }
  func.func @transform_5(%arg0: i32) -> (i32, i32) {
    %c0_i32 = arith.constant 0 : i32
    %c0_i32_0 = arith.constant 0 : i32
    %c0_i32_1 = arith.constant 0 : i32
    return %c0_i32, %c0_i32_0 : i32, i32
  }
  func.func @transform_6(%arg0: i32) -> (i32, i32) {
    %c0_i32 = arith.constant 0 : i32
    %c0_i32_0 = arith.constant 0 : i32
    %c0_i32_1 = arith.constant 0 : i32
    return %c0_i32, %c0_i32_0 : i32, i32
  }
  func.func @transform_7(%arg0: i32) -> (i32, i32) {
    %c0_i32 = arith.constant 0 : i32
    %c0_i32_0 = arith.constant 0 : i32
    return %arg0, %c0_i32 : i32, i32
  }
}

</mosaic_0001>

<llo_original>
// kernel: _lambda_.1
$region0: #{_lambda_.1}
  #allocation0 [shape = 'u32[]', space=smem, size = 0x4, offset = 0x4, fixed_abs, tag = 'smem constant byte address 0x4 - core index']
  #allocation1 [shape = 'u32[144,128]{1,0:T(1,128)}', space=vmem, size = 0x12000, scoped, tag = 'internal scratch']
  %s0 = inlined_call_operand.vmem [shape: f32[8,2800], index: 0, kind: input, shape index: {}]
  %s1 = inlined_call_operand.vmem [shape: bf16[2800,256], index: 1, kind: input, shape index: {}]
  %s2 = inlined_call_operand.vmem [shape: f32[1,256], index: 2, kind: input, shape index: {}]
  %s3 = inlined_call_operand.vmem [shape: bf16[256,128], index: 3, kind: input, shape index: {}]
  %s4 = inlined_call_operand.vmem [shape: f32[1,128], index: 4, kind: input, shape index: {}]
  %s5 = inlined_call_operand.vmem [shape: bf16[128,128], index: 5, kind: input, shape index: {}]
  %s6 = inlined_call_operand.vmem [shape: f32[1,128], index: 6, kind: input, shape index: {}]
  %s7 = inlined_call_operand.vmem [shape: bf16[8,128], index: 7, kind: output, shape index: {}]
  %s8 = sld [smem:[#allocation0]]
  $region38: #{_lambda_.1} parent=0
    _
  %s10 = ssub.s32 1, %s8
  %s11 = scalar_select 0, %s10, %s8
  // Predicated region
  $region2: #{_lambda_.1} parent=0 // pred_check
    _
  $region3: #{_lambda_.1} parent=0 // pred_check_branch
    %13 = sbr.rel (0) target = $region5
  $region4: #{_lambda_.1} parent=0 // pred_region
    _
  $region5: #{_lambda_.1} parent=0 // pred_fallthru
    _
  // Predicated region
  $region6: #{_lambda_.1} parent=0 // pred_check
    _
  $region7: #{_lambda_.1} parent=0 // pred_check_branch
    %15 = sbr.rel (0) target = $region9
  $region8: #{_lambda_.1} parent=0 // pred_region
    _
  $region9: #{_lambda_.1} parent=0 // pred_fallthru
    _
  // Predicated region
  $region10: #{_lambda_.1} parent=0 // pred_check
    _
  $region11: #{_lambda_.1} parent=0 // pred_check_branch
    %17 = sbr.rel (0) target = $region13
  $region12: #{_lambda_.1} parent=0 // pred_region
    _
  $region13: #{_lambda_.1} parent=0 // pred_fallthru
    _
  // Predicated region
  $region14: #{_lambda_.1} parent=0 // pred_check
    _
  $region15: #{_lambda_.1} parent=0 // pred_check_branch
    %19 = sbr.rel (0) target = $region17
  $region16: #{_lambda_.1} parent=0 // pred_region
    _
  $region17: #{_lambda_.1} parent=0 // pred_fallthru
    _
  // Predicated region
  $region18: #{_lambda_.1} parent=0 // pred_check
    _
  $region19: #{_lambda_.1} parent=0 // pred_check_branch
    %21 = sbr.rel (0) target = $region21
  $region20: #{_lambda_.1} parent=0 // pred_region
    _
  $region21: #{_lambda_.1} parent=0 // pred_fallthru
    _
  // Predicated region
  $region22: #{_lambda_.1} parent=0 // pred_check
    _
  $region23: #{_lambda_.1} parent=0 // pred_check_branch
    %23 = sbr.rel (0) target = $region25
  $region24: #{_lambda_.1} parent=0 // pred_region
    _
  $region25: #{_lambda_.1} parent=0 // pred_fallthru
    _
  // Predicated region
  $region26: #{_lambda_.1} parent=0 // pred_check
    _
  $region27: #{_lambda_.1} parent=0 // pred_check_branch
    %25 = sbr.rel (0) target = $region29
  $region28: #{_lambda_.1} parent=0 // pred_region
    _
  $region29: #{_lambda_.1} parent=0 // pred_fallthru
    _
  %v27 = vld [vmem:[%s0] sm:$0xff]
  %v28 = vld [vmem:[%s0 + $0x8] sm:$0xff]
  %v29 = vld [vmem:[%s0 + $0x10] sm:$0xff]
  %v30 = vld [vmem:[%s0 + $0x18] sm:$0xff]
  %v31 = vld [vmem:[%s0 + $0x20] sm:$0xff]
  %v32 = vld [vmem:[%s0 + $0x28] sm:$0xff]
  %v33 = vld [vmem:[%s0 + $0x30] sm:$0xff]
  %v34 = vld [vmem:[%s0 + $0x38] sm:$0xff]
  %v35 = vld [vmem:[%s0 + $0x40] sm:$0xff]
  %v36 = vld [vmem:[%s0 + $0x48] sm:$0xff]
  %v37 = vld [vmem:[%s0 + $0x50] sm:$0xff]
  %v38 = vld [vmem:[%s0 + $0x58] sm:$0xff]
  %v39 = vld [vmem:[%s0 + $0x60] sm:$0xff]
  %v40 = vld [vmem:[%s0 + $0x68] sm:$0xff]
  %v41 = vld [vmem:[%s0 + $0x70] sm:$0xff]
  %v42 = vld [vmem:[%s0 + $0x78] sm:$0xff]
  %v43 = vld [vmem:[%s0 + $0x80] sm:$0xff]
  %v44 = vld [vmem:[%s0 + $0x88] sm:$0xff]
  %v45 = vld [vmem:[%s0 + $0x90] sm:$0xff]
  %v46 = vld [vmem:[%s0 + $0x98] sm:$0xff]
  %v47 = vld [vmem:[%s0 + $0xa0] sm:$0xff]
  %v48 = vld [vmem:[%s0 + $0xa8] sm:$0xff]
  %v49 = vpack.c.bf16 %v27, %v27
  %v50 = vpack.c.bf16 %v28, %v28
  %v51 = vpack.c.bf16 %v29, %v29
  %v52 = vpack.c.bf16 %v30, %v30
  %v53 = vpack.c.bf16 %v31, %v31
  %v54 = vpack.c.bf16 %v32, %v32
  %v55 = vpack.c.bf16 %v33, %v33
  %v56 = vpack.c.bf16 %v34, %v34
  %v57 = vpack.c.bf16 %v35, %v35
  %v58 = vpack.c.bf16 %v36, %v36
  %v59 = vpack.c.bf16 %v37, %v37
  %v60 = vpack.c.bf16 %v38, %v38
  %v61 = vpack.c.bf16 %v39, %v39
  %v62 = vpack.c.bf16 %v40, %v40
  %v63 = vpack.c.bf16 %v41, %v41
  %v64 = vpack.c.bf16 %v42, %v42
  %v65 = vpack.c.bf16 %v43, %v43
  %v66 = vpack.c.bf16 %v44, %v44
  %v67 = vpack.c.bf16 %v45, %v45
  %v68 = vpack.c.bf16 %v46, %v46
  %v69 = vpack.c.bf16 %v47, %v47
  %v70 = vpack.c.bf16 %v48, %v48
  %v71 = vld [vmem:[%s1] sm:$0xff]
  %v72 = vld [vmem:[%s1 + $0x8] sm:$0xff]
  %v73 = vld [vmem:[%s1 + $0x10] sm:$0xff]
  %v74 = vld [vmem:[%s1 + $0x18] sm:$0xff]
  %v75 = vld [vmem:[%s1 + $0x20] sm:$0xff]
  %v76 = vld [vmem:[%s1 + $0x28] sm:$0xff]
  %v77 = vld [vmem:[%s1 + $0x30] sm:$0xff]
  %v78 = vld [vmem:[%s1 + $0x38] sm:$0xff]
  %v79 = vld [vmem:[%s1 + $0x40] sm:$0xff]
  %v80 = vld [vmem:[%s1 + $0x48] sm:$0xff]
  %v81 = vld [vmem:[%s1 + $0x50] sm:$0xff]
  %v82 = vld [vmem:[%s1 + $0x58] sm:$0xff]
  %v83 = vld [vmem:[%s1 + $0x60] sm:$0xff]
  %v84 = vld [vmem:[%s1 + $0x68] sm:$0xff]
  %v85 = vld [vmem:[%s1 + $0x70] sm:$0xff]
  %v86 = vld [vmem:[%s1 + $0x78] sm:$0xff]
  %v87 = vld [vmem:[%s1 + $0x80] sm:$0xff]
  %v88 = vld [vmem:[%s1 + $0x88] sm:$0xff]
  %v89 = vld [vmem:[%s1 + $0x90] sm:$0xff]
  %v90 = vld [vmem:[%s1 + $0x98] sm:$0xff]
  %v91 = vld [vmem:[%s1 + $0xa0] sm:$0xff]
  %v92 = vld [vmem:[%s1 + $0xa8] sm:$0xff]
  %v93 = vld [vmem:[%s1 + $0xb0] sm:$0xff]
  %v94 = vld [vmem:[%s1 + $0xb8] sm:$0xff]
  %v95 = vld [vmem:[%s1 + $0xc0] sm:$0xff]
  %v96 = vld [vmem:[%s1 + $0xc8] sm:$0xff]
  %v97 = vld [vmem:[%s1 + $0xd0] sm:$0xff]
  %v98 = vld [vmem:[%s1 + $0xd8] sm:$0xff]
  %v99 = vld [vmem:[%s1 + $0xe0] sm:$0xff]
  %v100 = vld [vmem:[%s1 + $0xe8] sm:$0xff]
  %v101 = vld [vmem:[%s1 + $0xf0] sm:$0xff]
  %v102 = vld [vmem:[%s1 + $0xf8] sm:$0xff]
  %v103 = vld [vmem:[%s1 + $0x100] sm:$0xff]
  %v104 = vld [vmem:[%s1 + $0x108] sm:$0xff]
  %v105 = vld [vmem:[%s1 + $0x110] sm:$0xff]
  %v106 = vld [vmem:[%s1 + $0x118] sm:$0xff]
  %v107 = vld [vmem:[%s1 + $0x120] sm:$0xff]
  %v108 = vld [vmem:[%s1 + $0x128] sm:$0xff]
  %v109 = vld [vmem:[%s1 + $0x130] sm:$0xff]
  %v110 = vld [vmem:[%s1 + $0x138] sm:$0xff]
  %v111 = vld [vmem:[%s1 + $0x140] sm:$0xff]
  %v112 = vld [vmem:[%s1 + $0x148] sm:$0xff]
  %v113 = vld [vmem:[%s1 + $0x150] sm:$0xff]
  %v114 = vld [vmem:[%s1 + $0x158] sm:$0xff]
  %v115 = vld [vmem:[%s1 + $0x160] sm:$0xff]
  %v116 = vld [vmem:[%s1 + $0x168] sm:$0xff]
  %v117 = vld [vmem:[%s1 + $0x170] sm:$0xff]
  %v118 = vld [vmem:[%s1 + $0x178] sm:$0xff]
  %v119 = vld [vmem:[%s1 + $0x180] sm:$0xff]
  %v120 = vld [vmem:[%s1 + $0x188] sm:$0xff]
  %v121 = vld [vmem:[%s1 + $0x190] sm:$0xff]
  %v122 = vld [vmem:[%s1 + $0x198] sm:$0xff]
  %v123 = vld [vmem:[%s1 + $0x1a0] sm:$0xff]
  %v124 = vld [vmem:[%s1 + $0x1a8] sm:$0xff]
  %v125 = vld [vmem:[%s1 + $0x1b0] sm:$0xff]
  %v126 = vld [vmem:[%s1 + $0x1b8] sm:$0xff]
  %v127 = vld [vmem:[%s1 + $0x1c0] sm:$0xff]
  %v128 = vld [vmem:[%s1 + $0x1c8] sm:$0xff]
  %v129 = vld [vmem:[%s1 + $0x1d0] sm:$0xff]
  %v130 = vld [vmem:[%s1 + $0x1d8] sm:$0xff]
  %v131 = vld [vmem:[%s1 + $0x1e0] sm:$0xff]
  %v132 = vld [vmem:[%s1 + $0x1e8] sm:$0xff]
  %v133 = vld [vmem:[%s1 + $0x1f0] sm:$0xff]
  %v134 = vld [vmem:[%s1 + $0x1f8] sm:$0xff]
  %v135 = vld [vmem:[%s1 + $0x200] sm:$0xff]
  %v136 = vld [vmem:[%s1 + $0x208] sm:$0xff]
  %v137 = vld [vmem:[%s1 + $0x210] sm:$0xff]
  %v138 = vld [vmem:[%s1 + $0x218] sm:$0xff]
  %v139 = vld [vmem:[%s1 + $0x220] sm:$0xff]
  %v140 = vld [vmem:[%s1 + $0x228] sm:$0xff]
  %v141 = vld [vmem:[%s1 + $0x230] sm:$0xff]
  %v142 = vld [vmem:[%s1 + $0x238] sm:$0xff]
  %v143 = vld [vmem:[%s1 + $0x240] sm:$0xff]
  %v144 = vld [vmem:[%s1 + $0x248] sm:$0xff]
  %v145 = vld [vmem:[%s1 + $0x250] sm:$0xff]
  %v146 = vld [vmem:[%s1 + $0x258] sm:$0xff]
  %v147 = vld [vmem:[%s1 + $0x260] sm:$0xff]
  %v148 = vld [vmem:[%s1 + $0x268] sm:$0xff]
  %v149 = vld [vmem:[%s1 + $0x270] sm:$0xff]
  %v150 = vld [vmem:[%s1 + $0x278] sm:$0xff]
  %v151 = vld [vmem:[%s1 + $0x280] sm:$0xff]
  %v152 = vld [vmem:[%s1 + $0x288] sm:$0xff]
  %v153 = vld [vmem:[%s1 + $0x290] sm:$0xff]
  %v154 = vld [vmem:[%s1 + $0x298] sm:$0xff]
  %v155 = vld [vmem:[%s1 + $0x2a0] sm:$0xff]
  %v156 = vld [vmem:[%s1 + $0x2a8] sm:$0xff]
  %v157 = vld [vmem:[%s1 + $0x2b0] sm:$0xff]
  %v158 = vld [vmem:[%s1 + $0x2b8] sm:$0xff]
  %v159 = vld [vmem:[%s1 + $0x2c0] sm:$0xff]
  %v160 = vld [vmem:[%s1 + $0x2c8] sm:$0xff]
  %v161 = vld [vmem:[%s1 + $0x2d0] sm:$0xff]
  %v162 = vld [vmem:[%s1 + $0x2d8] sm:$0xff]
  %v163 = vld [vmem:[%s1 + $0x2e0] sm:$0xff]
  %v164 = vld [vmem:[%s1 + $0x2e8] sm:$0xff]
  %v165 = vld [vmem:[%s1 + $0x2f0] sm:$0xff]
  %v166 = vld [vmem:[%s1 + $0x2f8] sm:$0xff]
  %v167 = vld [vmem:[%s1 + $0x300] sm:$0xff]
  %v168 = vld [vmem:[%s1 + $0x308] sm:$0xff]
  %v169 = vld [vmem:[%s1 + $0x310] sm:$0xff]
  %v170 = vld [vmem:[%s1 + $0x318] sm:$0xff]
  %v171 = vld [vmem:[%s1 + $0x320] sm:$0xff]
  %v172 = vld [vmem:[%s1 + $0x328] sm:$0xff]
  %v173 = vld [vmem:[%s1 + $0x330] sm:$0xff]
  %v174 = vld [vmem:[%s1 + $0x338] sm:$0xff]
  %v175 = vld [vmem:[%s1 + $0x340] sm:$0xff]
  %v176 = vld [vmem:[%s1 + $0x348] sm:$0xff]
  %v177 = vld [vmem:[%s1 + $0x350] sm:$0xff]
  %v178 = vld [vmem:[%s1 + $0x358] sm:$0xff]
  %v179 = vld [vmem:[%s1 + $0x360] sm:$0xff]
  %v180 = vld [vmem:[%s1 + $0x368] sm:$0xff]
  %v181 = vld [vmem:[%s1 + $0x370] sm:$0xff]
  %v182 = vld [vmem:[%s1 + $0x378] sm:$0xff]
  %v183 = vld [vmem:[%s1 + $0x380] sm:$0xff]
  %v184 = vld [vmem:[%s1 + $0x388] sm:$0xff]
  %v185 = vld [vmem:[%s1 + $0x390] sm:$0xff]
  %v186 = vld [vmem:[%s1 + $0x398] sm:$0xff]
  %v187 = vld [vmem:[%s1 + $0x3a0] sm:$0xff]
  %v188 = vld [vmem:[%s1 + $0x3a8] sm:$0xff]
  %v189 = vld [vmem:[%s1 + $0x3b0] sm:$0xff]
  %v190 = vld [vmem:[%s1 + $0x3b8] sm:$0xff]
  %v191 = vld [vmem:[%s1 + $0x3c0] sm:$0xff]
  %v192 = vld [vmem:[%s1 + $0x3c8] sm:$0xff]
  %v193 = vld [vmem:[%s1 + $0x3d0] sm:$0xff]
  %v194 = vld [vmem:[%s1 + $0x3d8] sm:$0xff]
  %v195 = vld [vmem:[%s1 + $0x3e0] sm:$0xff]
  %v196 = vld [vmem:[%s1 + $0x3e8] sm:$0xff]
  %v197 = vld [vmem:[%s1 + $0x3f0] sm:$0xff]
  %v198 = vld [vmem:[%s1 + $0x3f8] sm:$0xff]
  %v199 = vld [vmem:[%s1 + $0x400] sm:$0xff]
  %v200 = vld [vmem:[%s1 + $0x408] sm:$0xff]
  %v201 = vld [vmem:[%s1 + $0x410] sm:$0xff]
  %v202 = vld [vmem:[%s1 + $0x418] sm:$0xff]
  %v203 = vld [vmem:[%s1 + $0x420] sm:$0xff]
  %v204 = vld [vmem:[%s1 + $0x428] sm:$0xff]
  %v205 = vld [vmem:[%s1 + $0x430] sm:$0xff]
  %v206 = vld [vmem:[%s1 + $0x438] sm:$0xff]
  %v207 = vld [vmem:[%s1 + $0x440] sm:$0xff]
  %v208 = vld [vmem:[%s1 + $0x448] sm:$0xff]
  %v209 = vld [vmem:[%s1 + $0x450] sm:$0xff]
  %v210 = vld [vmem:[%s1 + $0x458] sm:$0xff]
  %v211 = vld [vmem:[%s1 + $0x460] sm:$0xff]
  %v212 = vld [vmem:[%s1 + $0x468] sm:$0xff]
  %v213 = vld [vmem:[%s1 + $0x470] sm:$0xff]
  %v214 = vld [vmem:[%s1 + $0x478] sm:$0xff]
  %v215 = vld [vmem:[%s1 + $0x480] sm:$0xff]
  %v216 = vld [vmem:[%s1 + $0x488] sm:$0xff]
  %v217 = vld [vmem:[%s1 + $0x490] sm:$0xff]
  %v218 = vld [vmem:[%s1 + $0x498] sm:$0xff]
  %v219 = vld [vmem:[%s1 + $0x4a0] sm:$0xff]
  %v220 = vld [vmem:[%s1 + $0x4a8] sm:$0xff]
  %v221 = vld [vmem:[%s1 + $0x4b0] sm:$0xff]
  %v222 = vld [vmem:[%s1 + $0x4b8] sm:$0xff]
  %v223 = vld [vmem:[%s1 + $0x4c0] sm:$0xff]
  %v224 = vld [vmem:[%s1 + $0x4c8] sm:$0xff]
  %v225 = vld [vmem:[%s1 + $0x4d0] sm:$0xff]
  %v226 = vld [vmem:[%s1 + $0x4d8] sm:$0xff]
  %v227 = vld [vmem:[%s1 + $0x4e0] sm:$0xff]
  %v228 = vld [vmem:[%s1 + $0x4e8] sm:$0xff]
  %v229 = vld [vmem:[%s1 + $0x4f0] sm:$0xff]
  %v230 = vld [vmem:[%s1 + $0x4f8] sm:$0xff]
  %v231 = vld [vmem:[%s1 + $0x500] sm:$0xff]
  %v232 = vld [vmem:[%s1 + $0x508] sm:$0xff]
  %v233 = vld [vmem:[%s1 + $0x510] sm:$0xff]
  %v234 = vld [vmem:[%s1 + $0x518] sm:$0xff]
  %v235 = vld [vmem:[%s1 + $0x520] sm:$0xff]
  %v236 = vld [vmem:[%s1 + $0x528] sm:$0xff]
  %v237 = vld [vmem:[%s1 + $0x530] sm:$0xff]
  %v238 = vld [vmem:[%s1 + $0x538] sm:$0xff]
  %v239 = vld [vmem:[%s1 + $0x540] sm:$0xff]
  %v240 = vld [vmem:[%s1 + $0x548] sm:$0xff]
  %v241 = vld [vmem:[%s1 + $0x550] sm:$0xff]
  %v242 = vld [vmem:[%s1 + $0x558] sm:$0xff]
  %v243 = vld [vmem:[%s1 + $0x560] sm:$0xff]
  %v244 = vld [vmem:[%s1 + $0x568] sm:$0xff]
  %v245 = vld [vmem:[%s1 + $0x570] sm:$0xff]
  %v246 = vld [vmem:[%s1 + $0x578] sm:$0xff]
  %v247 = vld [vmem:[%s1 + $0x580] sm:$0xff]
  %v248 = vld [vmem:[%s1 + $0x588] sm:$0xff]
  %v249 = vld [vmem:[%s1 + $0x590] sm:$0xff]
  %v250 = vld [vmem:[%s1 + $0x598] sm:$0xff]
  %v251 = vld [vmem:[%s1 + $0x5a0] sm:$0xff]
  %v252 = vld [vmem:[%s1 + $0x5a8] sm:$0xff]
  %v253 = vld [vmem:[%s1 + $0x5b0] sm:$0xff]
  %v254 = vld [vmem:[%s1 + $0x5b8] sm:$0xff]
  %v255 = vld [vmem:[%s1 + $0x5c0] sm:$0xff]
  %v256 = vld [vmem:[%s1 + $0x5c8] sm:$0xff]
  %v257 = vld [vmem:[%s1 + $0x5d0] sm:$0xff]
  %v258 = vld [vmem:[%s1 + $0x5d8] sm:$0xff]
  %v259 = vld [vmem:[%s1 + $0x5e0] sm:$0xff]
  %v260 = vld [vmem:[%s1 + $0x5e8] sm:$0xff]
  %v261 = vld [vmem:[%s1 + $0x5f0] sm:$0xff]
  %v262 = vld [vmem:[%s1 + $0x5f8] sm:$0xff]
  %v263 = vld [vmem:[%s1 + $0x600] sm:$0xff]
  %v264 = vld [vmem:[%s1 + $0x608] sm:$0xff]
  %v265 = vld [vmem:[%s1 + $0x610] sm:$0xff]
  %v266 = vld [vmem:[%s1 + $0x618] sm:$0xff]
  %v267 = vld [vmem:[%s1 + $0x620] sm:$0xff]
  %v268 = vld [vmem:[%s1 + $0x628] sm:$0xff]
  %v269 = vld [vmem:[%s1 + $0x630] sm:$0xff]
  %v270 = vld [vmem:[%s1 + $0x638] sm:$0xff]
  %v271 = vld [vmem:[%s1 + $0x640] sm:$0xff]
  %v272 = vld [vmem:[%s1 + $0x648] sm:$0xff]
  %v273 = vld [vmem:[%s1 + $0x650] sm:$0xff]
  %v274 = vld [vmem:[%s1 + $0x658] sm:$0xff]
  %v275 = vld [vmem:[%s1 + $0x660] sm:$0xff]
  %v276 = vld [vmem:[%s1 + $0x668] sm:$0xff]
  %v277 = vld [vmem:[%s1 + $0x670] sm:$0xff]
  %v278 = vld [vmem:[%s1 + $0x678] sm:$0xff]
  %v279 = vld [vmem:[%s1 + $0x680] sm:$0xff]
  %v280 = vld [vmem:[%s1 + $0x688] sm:$0xff]
  %v281 = vld [vmem:[%s1 + $0x690] sm:$0xff]
  %v282 = vld [vmem:[%s1 + $0x698] sm:$0xff]
  %v283 = vld [vmem:[%s1 + $0x6a0] sm:$0xff]
  %v284 = vld [vmem:[%s1 + $0x6a8] sm:$0xff]
  %v285 = vld [vmem:[%s1 + $0x6b0] sm:$0xff]
  %v286 = vld [vmem:[%s1 + $0x6b8] sm:$0xff]
  %v287 = vld [vmem:[%s1 + $0x6c0] sm:$0xff]
  %v288 = vld [vmem:[%s1 + $0x6c8] sm:$0xff]
  %v289 = vld [vmem:[%s1 + $0x6d0] sm:$0xff]
  %v290 = vld [vmem:[%s1 + $0x6d8] sm:$0xff]
  %v291 = vld [vmem:[%s1 + $0x6e0] sm:$0xff]
  %v292 = vld [vmem:[%s1 + $0x6e8] sm:$0xff]
  %v293 = vld [vmem:[%s1 + $0x6f0] sm:$0xff]
  %v294 = vld [vmem:[%s1 + $0x6f8] sm:$0xff]
  %v295 = vld [vmem:[%s1 + $0x700] sm:$0xff]
  %v296 = vld [vmem:[%s1 + $0x708] sm:$0xff]
  %v297 = vld [vmem:[%s1 + $0x710] sm:$0xff]
  %v298 = vld [vmem:[%s1 + $0x718] sm:$0xff]
  %v299 = vld [vmem:[%s1 + $0x720] sm:$0xff]
  %v300 = vld [vmem:[%s1 + $0x728] sm:$0xff]
  %v301 = vld [vmem:[%s1 + $0x730] sm:$0xff]
  %v302 = vld [vmem:[%s1 + $0x738] sm:$0xff]
  %v303 = vld [vmem:[%s1 + $0x740] sm:$0xff]
  %v304 = vld [vmem:[%s1 + $0x748] sm:$0xff]
  %v305 = vld [vmem:[%s1 + $0x750] sm:$0xff]
  %v306 = vld [vmem:[%s1 + $0x758] sm:$0xff]
  %v307 = vld [vmem:[%s1 + $0x760] sm:$0xff]
  %v308 = vld [vmem:[%s1 + $0x768] sm:$0xff]
  %v309 = vld [vmem:[%s1 + $0x770] sm:$0xff]
  %v310 = vld [vmem:[%s1 + $0x778] sm:$0xff]
  %v311 = vld [vmem:[%s1 + $0x780] sm:$0xff]
  %v312 = vld [vmem:[%s1 + $0x788] sm:$0xff]
  %v313 = vld [vmem:[%s1 + $0x790] sm:$0xff]
  %v314 = vld [vmem:[%s1 + $0x798] sm:$0xff]
  %v315 = vld [vmem:[%s1 + $0x7a0] sm:$0xff]
  %v316 = vld [vmem:[%s1 + $0x7a8] sm:$0xff]
  %v317 = vld [vmem:[%s1 + $0x7b0] sm:$0xff]
  %v318 = vld [vmem:[%s1 + $0x7b8] sm:$0xff]
  %v319 = vld [vmem:[%s1 + $0x7c0] sm:$0xff]
  %v320 = vld [vmem:[%s1 + $0x7c8] sm:$0xff]
  %v321 = vld [vmem:[%s1 + $0x7d0] sm:$0xff]
  %v322 = vld [vmem:[%s1 + $0x7d8] sm:$0xff]
  %v323 = vld [vmem:[%s1 + $0x7e0] sm:$0xff]
  %v324 = vld [vmem:[%s1 + $0x7e8] sm:$0xff]
  %v325 = vld [vmem:[%s1 + $0x7f0] sm:$0xff]
  %v326 = vld [vmem:[%s1 + $0x7f8] sm:$0xff]
  %v327 = vld [vmem:[%s1 + $0x800] sm:$0xff]
  %v328 = vld [vmem:[%s1 + $0x808] sm:$0xff]
  %v329 = vld [vmem:[%s1 + $0x810] sm:$0xff]
  %v330 = vld [vmem:[%s1 + $0x818] sm:$0xff]
  %v331 = vld [vmem:[%s1 + $0x820] sm:$0xff]
  %v332 = vld [vmem:[%s1 + $0x828] sm:$0xff]
  %v333 = vld [vmem:[%s1 + $0x830] sm:$0xff]
  %v334 = vld [vmem:[%s1 + $0x838] sm:$0xff]
  %v335 = vld [vmem:[%s1 + $0x840] sm:$0xff]
  %v336 = vld [vmem:[%s1 + $0x848] sm:$0xff]
  %v337 = vld [vmem:[%s1 + $0x850] sm:$0xff]
  %v338 = vld [vmem:[%s1 + $0x858] sm:$0xff]
  %v339 = vld [vmem:[%s1 + $0x860] sm:$0xff]
  %v340 = vld [vmem:[%s1 + $0x868] sm:$0xff]
  %v341 = vld [vmem:[%s1 + $0x870] sm:$0xff]
  %v342 = vld [vmem:[%s1 + $0x878] sm:$0xff]
  %v343 = vld [vmem:[%s1 + $0x880] sm:$0xff]
  %v344 = vld [vmem:[%s1 + $0x888] sm:$0xff]
  %v345 = vld [vmem:[%s1 + $0x890] sm:$0xff]
  %v346 = vld [vmem:[%s1 + $0x898] sm:$0xff]
  %v347 = vld [vmem:[%s1 + $0x8a0] sm:$0xff]
  %v348 = vld [vmem:[%s1 + $0x8a8] sm:$0xff]
  %v349 = vld [vmem:[%s1 + $0x8b0] sm:$0xff]
  %v350 = vld [vmem:[%s1 + $0x8b8] sm:$0xff]
  %v351 = vld [vmem:[%s1 + $0x8c0] sm:$0xff]
  %v352 = vld [vmem:[%s1 + $0x8c8] sm:$0xff]
  %v353 = vld [vmem:[%s1 + $0x8d0] sm:$0xff]
  %v354 = vld [vmem:[%s1 + $0x8d8] sm:$0xff]
  %v355 = vld [vmem:[%s1 + $0x8e0] sm:$0xff]
  %v356 = vld [vmem:[%s1 + $0x8e8] sm:$0xff]
  %v357 = vld [vmem:[%s1 + $0x8f0] sm:$0xff]
  %v358 = vld [vmem:[%s1 + $0x8f8] sm:$0xff]
  %v359 = vld [vmem:[%s1 + $0x900] sm:$0xff]
  %v360 = vld [vmem:[%s1 + $0x908] sm:$0xff]
  %v361 = vld [vmem:[%s1 + $0x910] sm:$0xff]
  %v362 = vld [vmem:[%s1 + $0x918] sm:$0xff]
  %v363 = vld [vmem:[%s1 + $0x920] sm:$0xff]
  %v364 = vld [vmem:[%s1 + $0x928] sm:$0xff]
  %v365 = vld [vmem:[%s1 + $0x930] sm:$0xff]
  %v366 = vld [vmem:[%s1 + $0x938] sm:$0xff]
  %v367 = vld [vmem:[%s1 + $0x940] sm:$0xff]
  %v368 = vld [vmem:[%s1 + $0x948] sm:$0xff]
  %v369 = vld [vmem:[%s1 + $0x950] sm:$0xff]
  %v370 = vld [vmem:[%s1 + $0x958] sm:$0xff]
  %v371 = vld [vmem:[%s1 + $0x960] sm:$0xff]
  %v372 = vld [vmem:[%s1 + $0x968] sm:$0xff]
  %v373 = vld [vmem:[%s1 + $0x970] sm:$0xff]
  %v374 = vld [vmem:[%s1 + $0x978] sm:$0xff]
  %v375 = vld [vmem:[%s1 + $0x980] sm:$0xff]
  %v376 = vld [vmem:[%s1 + $0x988] sm:$0xff]
  %v377 = vld [vmem:[%s1 + $0x990] sm:$0xff]
  %v378 = vld [vmem:[%s1 + $0x998] sm:$0xff]
  %v379 = vld [vmem:[%s1 + $0x9a0] sm:$0xff]
  %v380 = vld [vmem:[%s1 + $0x9a8] sm:$0xff]
  %v381 = vld [vmem:[%s1 + $0x9b0] sm:$0xff]
  %v382 = vld [vmem:[%s1 + $0x9b8] sm:$0xff]
  %v383 = vld [vmem:[%s1 + $0x9c0] sm:$0xff]
  %v384 = vld [vmem:[%s1 + $0x9c8] sm:$0xff]
  %v385 = vld [vmem:[%s1 + $0x9d0] sm:$0xff]
  %v386 = vld [vmem:[%s1 + $0x9d8] sm:$0xff]
  %v387 = vld [vmem:[%s1 + $0x9e0] sm:$0xff]
  %v388 = vld [vmem:[%s1 + $0x9e8] sm:$0xff]
  %v389 = vld [vmem:[%s1 + $0x9f0] sm:$0xff]
  %v390 = vld [vmem:[%s1 + $0x9f8] sm:$0xff]
  %v391 = vld [vmem:[%s1 + $0xa00] sm:$0xff]
  %v392 = vld [vmem:[%s1 + $0xa08] sm:$0xff]
  %v393 = vld [vmem:[%s1 + $0xa10] sm:$0xff]
  %v394 = vld [vmem:[%s1 + $0xa18] sm:$0xff]
  %v395 = vld [vmem:[%s1 + $0xa20] sm:$0xff]
  %v396 = vld [vmem:[%s1 + $0xa28] sm:$0xff]
  %v397 = vld [vmem:[%s1 + $0xa30] sm:$0xff]
  %v398 = vld [vmem:[%s1 + $0xa38] sm:$0xff]
  %v399 = vld [vmem:[%s1 + $0xa40] sm:$0xff]
  %v400 = vld [vmem:[%s1 + $0xa48] sm:$0xff]
  %v401 = vld [vmem:[%s1 + $0xa50] sm:$0xff]
  %v402 = vld [vmem:[%s1 + $0xa58] sm:$0xff]
  %v403 = vld [vmem:[%s1 + $0xa60] sm:$0xff]
  %v404 = vld [vmem:[%s1 + $0xa68] sm:$0xff]
  %v405 = vld [vmem:[%s1 + $0xa70] sm:$0xff]
  %v406 = vld [vmem:[%s1 + $0xa78] sm:$0xff]
  %v407 = vld [vmem:[%s1 + $0xa80] sm:$0xff]
  %v408 = vld [vmem:[%s1 + $0xa88] sm:$0xff]
  %v409 = vld [vmem:[%s1 + $0xa90] sm:$0xff]
  %v410 = vld [vmem:[%s1 + $0xa98] sm:$0xff]
  %v411 = vld [vmem:[%s1 + $0xaa0] sm:$0xff]
  %v412 = vld [vmem:[%s1 + $0xaa8] sm:$0xff]
  %v413 = vld [vmem:[%s1 + $0xab0] sm:$0xff]
  %v414 = vld [vmem:[%s1 + $0xab8] sm:$0xff]
  %v415 = vld [vmem:[%s1 + $0xac0] sm:$0xff]
  %v416 = vld [vmem:[%s1 + $0xac8] sm:$0xff]
  %v417 = vld [vmem:[%s1 + $0xad0] sm:$0xff]
  %v418 = vld [vmem:[%s1 + $0xad8] sm:$0xff]
  %v419 = vld [vmem:[%s1 + $0xae0] sm:$0xff]
  %v420 = vld [vmem:[%s1 + $0xae8] sm:$0xff]
  %v421 = vld [vmem:[%s2] sm:$0x3]
  %v423 = vlaneseq
  %v424 = vshrl.u32 %v423, 7
  %v425 = vsub.s32 0, %v424
  %v426 = vrot.slane %v421, %v425
  %v427 = vlaneseq
  %v428 = vshrl.u32 %v427, 7
  %v429 = vsub.s32 1, %v428
  %v430 = vrot.slane %v421, %v429
  %v783 = vunpack.c.l.b16 %v71
  %v784 = vunpack.c.h.b16 %v71
  %v785 = vunpack.c.l.b16 %v72
  %v786 = vunpack.c.h.b16 %v72
  %v787 = vunpack.c.l.b16 %v73
  %v788 = vunpack.c.h.b16 %v73
  %v789 = vunpack.c.l.b16 %v74
  %v790 = vunpack.c.h.b16 %v74
  %v791 = vunpack.c.l.b16 %v75
  %v792 = vunpack.c.h.b16 %v75
  %v793 = vunpack.c.l.b16 %v76
  %v794 = vunpack.c.h.b16 %v76
  %v795 = vunpack.c.l.b16 %v77
  %v796 = vunpack.c.h.b16 %v77
  %v797 = vunpack.c.l.b16 %v78
  %v798 = vunpack.c.h.b16 %v78
  %v799 = vunpack.c.l.b16 %v79
  %v800 = vunpack.c.h.b16 %v79
  %v801 = vunpack.c.l.b16 %v80
  %v802 = vunpack.c.h.b16 %v80
  %v803 = vunpack.c.l.b16 %v81
  %v804 = vunpack.c.h.b16 %v81
  %v805 = vunpack.c.l.b16 %v82
  %v806 = vunpack.c.h.b16 %v82
  %v807 = vunpack.c.l.b16 %v83
  %v808 = vunpack.c.h.b16 %v83
  %v809 = vunpack.c.l.b16 %v84
  %v810 = vunpack.c.h.b16 %v84
  %v811 = vunpack.c.l.b16 %v85
  %v812 = vunpack.c.h.b16 %v85
  %v813 = vunpack.c.l.b16 %v86
  %v814 = vunpack.c.h.b16 %v86
  %v815 = vunpack.c.l.b16 %v87
  %v816 = vunpack.c.h.b16 %v87
  %v817 = vunpack.c.l.b16 %v88
  %v818 = vunpack.c.h.b16 %v88
  %v819 = vunpack.c.l.b16 %v89
  %v820 = vunpack.c.h.b16 %v89
  %v821 = vunpack.c.l.b16 %v90
  %v822 = vunpack.c.h.b16 %v90
  %v823 = vunpack.c.l.b16 %v91
  %v824 = vunpack.c.h.b16 %v91
  %v825 = vunpack.c.l.b16 %v92
  %v826 = vunpack.c.h.b16 %v92
  %v827 = vunpack.c.l.b16 %v93
  %v828 = vunpack.c.h.b16 %v93
  %v829 = vunpack.c.l.b16 %v94
  %v830 = vunpack.c.h.b16 %v94
  %v831 = vunpack.c.l.b16 %v95
  %v832 = vunpack.c.h.b16 %v95
  %v833 = vunpack.c.l.b16 %v96
  %v834 = vunpack.c.h.b16 %v96
  %v835 = vunpack.c.l.b16 %v97
  %v836 = vunpack.c.h.b16 %v97
  %v837 = vunpack.c.l.b16 %v98
  %v838 = vunpack.c.h.b16 %v98
  %v839 = vunpack.c.l.b16 %v99
  %v840 = vunpack.c.h.b16 %v99
  %v841 = vunpack.c.l.b16 %v100
  %v842 = vunpack.c.h.b16 %v100
  %v843 = vunpack.c.l.b16 %v101
  %v844 = vunpack.c.h.b16 %v101
  %v845 = vunpack.c.l.b16 %v102
  %v846 = vunpack.c.h.b16 %v102
  %v847 = vunpack.c.l.b16 %v103
  %v848 = vunpack.c.h.b16 %v103
  %v849 = vunpack.c.l.b16 %v104
  %v850 = vunpack.c.h.b16 %v104
  %v851 = vunpack.c.l.b16 %v105
  %v852 = vunpack.c.h.b16 %v105
  %v853 = vunpack.c.l.b16 %v106
  %v854 = vunpack.c.h.b16 %v106
  %v855 = vunpack.c.l.b16 %v107
  %v856 = vunpack.c.h.b16 %v107
  %v857 = vunpack.c.l.b16 %v108
  %v858 = vunpack.c.h.b16 %v108
  %v859 = vunpack.c.l.b16 %v109
  %v860 = vunpack.c.h.b16 %v109
  %v861 = vunpack.c.l.b16 %v110
  %v862 = vunpack.c.h.b16 %v110
  %v863 = vunpack.c.l.b16 %v111
  %v864 = vunpack.c.h.b16 %v111
  %v865 = vunpack.c.l.b16 %v112
  %v866 = vunpack.c.h.b16 %v112
  %v867 = vunpack.c.l.b16 %v113
  %v868 = vunpack.c.h.b16 %v113
  %v869 = vunpack.c.l.b16 %v114
  %v870 = vunpack.c.h.b16 %v114
  %v871 = vunpack.c.l.b16 %v115
  %v872 = vunpack.c.h.b16 %v115
  %v873 = vunpack.c.l.b16 %v116
  %v874 = vunpack.c.h.b16 %v116
  %v875 = vunpack.c.l.b16 %v117
  %v876 = vunpack.c.h.b16 %v117
  %v877 = vunpack.c.l.b16 %v118
  %v878 = vunpack.c.h.b16 %v118
  %v879 = vunpack.c.l.b16 %v119
  %v880 = vunpack.c.h.b16 %v119
  %v881 = vunpack.c.l.b16 %v120
  %v882 = vunpack.c.h.b16 %v120
  %v883 = vunpack.c.l.b16 %v121
  %v884 = vunpack.c.h.b16 %v121
  %v885 = vunpack.c.l.b16 %v122
  %v886 = vunpack.c.h.b16 %v122
  %v887 = vunpack.c.l.b16 %v123
  %v888 = vunpack.c.h.b16 %v123
  %v889 = vunpack.c.l.b16 %v124
  %v890 = vunpack.c.h.b16 %v124
  %v891 = vunpack.c.l.b16 %v125
  %v892 = vunpack.c.h.b16 %v125
  %v893 = vunpack.c.l.b16 %v126
  %v894 = vunpack.c.h.b16 %v126
  %v895 = vunpack.c.l.b16 %v127
  %v896 = vunpack.c.h.b16 %v127
  %v897 = vunpack.c.l.b16 %v128
  %v898 = vunpack.c.h.b16 %v128
  %v899 = vunpack.c.l.b16 %v129
  %v900 = vunpack.c.h.b16 %v129
  %v901 = vunpack.c.l.b16 %v130
  %v902 = vunpack.c.h.b16 %v130
  %v903 = vunpack.c.l.b16 %v131
  %v904 = vunpack.c.h.b16 %v131
  %v905 = vunpack.c.l.b16 %v132
  %v906 = vunpack.c.h.b16 %v132
  %v907 = vunpack.c.l.b16 %v133
  %v908 = vunpack.c.h.b16 %v133
  %v909 = vunpack.c.l.b16 %v134
  %v910 = vunpack.c.h.b16 %v134
  %v911 = vunpack.c.l.b16 %v135
  %v912 = vunpack.c.h.b16 %v135
  %v913 = vunpack.c.l.b16 %v136
  %v914 = vunpack.c.h.b16 %v136
  %v915 = vunpack.c.l.b16 %v137
  %v916 = vunpack.c.h.b16 %v137
  %v917 = vunpack.c.l.b16 %v138
  %v918 = vunpack.c.h.b16 %v138
  %v919 = vunpack.c.l.b16 %v139
  %v920 = vunpack.c.h.b16 %v139
  %v921 = vunpack.c.l.b16 %v140
  %v922 = vunpack.c.h.b16 %v140
  %v923 = vunpack.c.l.b16 %v141
  %v924 = vunpack.c.h.b16 %v141
  %v925 = vunpack.c.l.b16 %v142
  %v926 = vunpack.c.h.b16 %v142
  %v927 = vunpack.c.l.b16 %v143
  %v928 = vunpack.c.h.b16 %v143
  %v929 = vunpack.c.l.b16 %v144
  %v930 = vunpack.c.h.b16 %v144
  %v931 = vunpack.c.l.b16 %v145
  %v932 = vunpack.c.h.b16 %v145
  %v933 = vunpack.c.l.b16 %v146
  %v934 = vunpack.c.h.b16 %v146
  %v935 = vunpack.c.l.b16 %v147
  %v936 = vunpack.c.h.b16 %v147
  %v937 = vunpack.c.l.b16 %v148
  %v938 = vunpack.c.h.b16 %v148
  %v939 = vunpack.c.l.b16 %v149
  %v940 = vunpack.c.h.b16 %v149
  %v941 = vunpack.c.l.b16 %v150
  %v942 = vunpack.c.h.b16 %v150
  %v943 = vunpack.c.l.b16 %v151
  %v944 = vunpack.c.h.b16 %v151
  %v945 = vunpack.c.l.b16 %v152
  %v946 = vunpack.c.h.b16 %v152
  %v947 = vunpack.c.l.b16 %v153
  %v948 = vunpack.c.h.b16 %v153
  %v949 = vunpack.c.l.b16 %v154
  %v950 = vunpack.c.h.b16 %v154
  %v951 = vunpack.c.l.b16 %v155
  %v952 = vunpack.c.h.b16 %v155
  %v953 = vunpack.c.l.b16 %v156
  %v954 = vunpack.c.h.b16 %v156
  %v955 = vunpack.c.l.b16 %v157
  %v956 = vunpack.c.h.b16 %v157
  %v957 = vunpack.c.l.b16 %v158
  %v958 = vunpack.c.h.b16 %v158
  %v959 = vunpack.c.l.b16 %v159
  %v960 = vunpack.c.h.b16 %v159
  %v961 = vunpack.c.l.b16 %v160
  %v962 = vunpack.c.h.b16 %v160
  %v963 = vunpack.c.l.b16 %v161
  %v964 = vunpack.c.h.b16 %v161
  %v965 = vunpack.c.l.b16 %v162
  %v966 = vunpack.c.h.b16 %v162
  %v967 = vunpack.c.l.b16 %v163
  %v968 = vunpack.c.h.b16 %v163
  %v969 = vunpack.c.l.b16 %v164
  %v970 = vunpack.c.h.b16 %v164
  %v971 = vunpack.c.l.b16 %v165
  %v972 = vunpack.c.h.b16 %v165
  %v973 = vunpack.c.l.b16 %v166
  %v974 = vunpack.c.h.b16 %v166
  %v975 = vunpack.c.l.b16 %v167
  %v976 = vunpack.c.h.b16 %v167
  %v977 = vunpack.c.l.b16 %v168
  %v978 = vunpack.c.h.b16 %v168
  %v979 = vunpack.c.l.b16 %v169
  %v980 = vunpack.c.h.b16 %v169
  %v981 = vunpack.c.l.b16 %v170
  %v982 = vunpack.c.h.b16 %v170
  %v983 = vunpack.c.l.b16 %v171
  %v984 = vunpack.c.h.b16 %v171
  %v985 = vunpack.c.l.b16 %v172
  %v986 = vunpack.c.h.b16 %v172
  %v987 = vunpack.c.l.b16 %v173
  %v988 = vunpack.c.h.b16 %v173
  %v989 = vunpack.c.l.b16 %v174
  %v990 = vunpack.c.h.b16 %v174
  %v991 = vunpack.c.l.b16 %v175
  %v992 = vunpack.c.h.b16 %v175
  %v993 = vunpack.c.l.b16 %v176
  %v994 = vunpack.c.h.b16 %v176
  %v995 = vunpack.c.l.b16 %v177
  %v996 = vunpack.c.h.b16 %v177
  %v997 = vunpack.c.l.b16 %v178
  %v998 = vunpack.c.h.b16 %v178
  %v999 = vunpack.c.l.b16 %v179
  %v1000 = vunpack.c.h.b16 %v179
  %v1001 = vunpack.c.l.b16 %v180
  %v1002 = vunpack.c.h.b16 %v180
  %v1003 = vunpack.c.l.b16 %v181
  %v1004 = vunpack.c.h.b16 %v181
  %v1005 = vunpack.c.l.b16 %v182
  %v1006 = vunpack.c.h.b16 %v182
  %v1007 = vunpack.c.l.b16 %v183
  %v1008 = vunpack.c.h.b16 %v183
  %v1009 = vunpack.c.l.b16 %v184
  %v1010 = vunpack.c.h.b16 %v184
  %v1011 = vunpack.c.l.b16 %v185
  %v1012 = vunpack.c.h.b16 %v185
  %v1013 = vunpack.c.l.b16 %v186
  %v1014 = vunpack.c.h.b16 %v186
  %v1015 = vunpack.c.l.b16 %v187
  %v1016 = vunpack.c.h.b16 %v187
  %v1017 = vunpack.c.l.b16 %v188
  %v1018 = vunpack.c.h.b16 %v188
  %v1019 = vunpack.c.l.b16 %v189
  %v1020 = vunpack.c.h.b16 %v189
  %v1021 = vunpack.c.l.b16 %v190
  %v1022 = vunpack.c.h.b16 %v190
  %v1023 = vunpack.c.l.b16 %v191
  %v1024 = vunpack.c.h.b16 %v191
  %v1025 = vunpack.c.l.b16 %v192
  %v1026 = vunpack.c.h.b16 %v192
  %v1027 = vunpack.c.l.b16 %v193
  %v1028 = vunpack.c.h.b16 %v193
  %v1029 = vunpack.c.l.b16 %v194
  %v1030 = vunpack.c.h.b16 %v194
  %v1031 = vunpack.c.l.b16 %v195
  %v1032 = vunpack.c.h.b16 %v195
  %v1033 = vunpack.c.l.b16 %v196
  %v1034 = vunpack.c.h.b16 %v196
  %v1035 = vunpack.c.l.b16 %v197
  %v1036 = vunpack.c.h.b16 %v197
  %v1037 = vunpack.c.l.b16 %v198
  %v1038 = vunpack.c.h.b16 %v198
  %v1039 = vunpack.c.l.b16 %v199
  %v1040 = vunpack.c.h.b16 %v199
  %v1041 = vunpack.c.l.b16 %v200
  %v1042 = vunpack.c.h.b16 %v200
  %v1043 = vunpack.c.l.b16 %v201
  %v1044 = vunpack.c.h.b16 %v201
  %v1045 = vunpack.c.l.b16 %v202
  %v1046 = vunpack.c.h.b16 %v202
  %v1047 = vunpack.c.l.b16 %v203
  %v1048 = vunpack.c.h.b16 %v203
  %v1049 = vunpack.c.l.b16 %v204
  %v1050 = vunpack.c.h.b16 %v204
  %v1051 = vunpack.c.l.b16 %v205
  %v1052 = vunpack.c.h.b16 %v205
  %v1053 = vunpack.c.l.b16 %v206
  %v1054 = vunpack.c.h.b16 %v206
  %v1055 = vunpack.c.l.b16 %v207
  %v1056 = vunpack.c.h.b16 %v207
  %v1057 = vunpack.c.l.b16 %v208
  %v1058 = vunpack.c.h.b16 %v208
  %v1059 = vunpack.c.l.b16 %v209
  %v1060 = vunpack.c.h.b16 %v209
  %v1061 = vunpack.c.l.b16 %v210
  %v1062 = vunpack.c.h.b16 %v210
  %v1063 = vunpack.c.l.b16 %v211
  %v1064 = vunpack.c.h.b16 %v211
  %v1065 = vunpack.c.l.b16 %v212
  %v1066 = vunpack.c.h.b16 %v212
  %v1067 = vunpack.c.l.b16 %v213
  %v1068 = vunpack.c.h.b16 %v213
  %v1069 = vunpack.c.l.b16 %v214
  %v1070 = vunpack.c.h.b16 %v214
  %v1071 = vunpack.c.l.b16 %v215
  %v1072 = vunpack.c.h.b16 %v215
  %v1073 = vunpack.c.l.b16 %v216
  %v1074 = vunpack.c.h.b16 %v216
  %v1075 = vunpack.c.l.b16 %v217
  %v1076 = vunpack.c.h.b16 %v217
  %v1077 = vunpack.c.l.b16 %v218
  %v1078 = vunpack.c.h.b16 %v218
  %v1079 = vunpack.c.l.b16 %v219
  %v1080 = vunpack.c.h.b16 %v219
  %v1081 = vunpack.c.l.b16 %v220
  %v1082 = vunpack.c.h.b16 %v220
  %v1083 = vunpack.c.l.b16 %v221
  %v1084 = vunpack.c.h.b16 %v221
  %v1085 = vunpack.c.l.b16 %v222
  %v1086 = vunpack.c.h.b16 %v222
  %v1087 = vunpack.c.l.b16 %v223
  %v1088 = vunpack.c.h.b16 %v223
  %v1089 = vunpack.c.l.b16 %v224
  %v1090 = vunpack.c.h.b16 %v224
  %v1091 = vunpack.c.l.b16 %v225
  %v1092 = vunpack.c.h.b16 %v225
  %v1093 = vunpack.c.l.b16 %v226
  %v1094 = vunpack.c.h.b16 %v226
  %v1095 = vunpack.c.l.b16 %v227
  %v1096 = vunpack.c.h.b16 %v227
  %v1097 = vunpack.c.l.b16 %v228
  %v1098 = vunpack.c.h.b16 %v228
  %v1099 = vunpack.c.l.b16 %v229
  %v1100 = vunpack.c.h.b16 %v229
  %v1101 = vunpack.c.l.b16 %v230
  %v1102 = vunpack.c.h.b16 %v230
  %v1103 = vunpack.c.l.b16 %v231
  %v1104 = vunpack.c.h.b16 %v231
  %v1105 = vunpack.c.l.b16 %v232
  %v1106 = vunpack.c.h.b16 %v232
  %v1107 = vunpack.c.l.b16 %v233
  %v1108 = vunpack.c.h.b16 %v233
  %v1109 = vunpack.c.l.b16 %v234
  %v1110 = vunpack.c.h.b16 %v234
  %v1111 = vunpack.c.l.b16 %v235
  %v1112 = vunpack.c.h.b16 %v235
  %v1113 = vunpack.c.l.b16 %v236
  %v1114 = vunpack.c.h.b16 %v236
  %v1115 = vunpack.c.l.b16 %v237
  %v1116 = vunpack.c.h.b16 %v237
  %v1117 = vunpack.c.l.b16 %v238
  %v1118 = vunpack.c.h.b16 %v238
  %v1119 = vunpack.c.l.b16 %v239
  %v1120 = vunpack.c.h.b16 %v239
  %v1121 = vunpack.c.l.b16 %v240
  %v1122 = vunpack.c.h.b16 %v240
  %v1123 = vunpack.c.l.b16 %v241
  %v1124 = vunpack.c.h.b16 %v241
  %v1125 = vunpack.c.l.b16 %v242
  %v1126 = vunpack.c.h.b16 %v242
  %v1127 = vunpack.c.l.b16 %v243
  %v1128 = vunpack.c.h.b16 %v243
  %v1129 = vunpack.c.l.b16 %v244
  %v1130 = vunpack.c.h.b16 %v244
  %v1131 = vunpack.c.l.b16 %v245
  %v1132 = vunpack.c.h.b16 %v245
  %v1133 = vunpack.c.l.b16 %v246
  %v1134 = vunpack.c.h.b16 %v246
  %v1135 = vunpack.c.l.b16 %v247
  %v1136 = vunpack.c.h.b16 %v247
  %v1137 = vunpack.c.l.b16 %v248
  %v1138 = vunpack.c.h.b16 %v248
  %v1139 = vunpack.c.l.b16 %v249
  %v1140 = vunpack.c.h.b16 %v249
  %v1141 = vunpack.c.l.b16 %v250
  %v1142 = vunpack.c.h.b16 %v250
  %v1143 = vunpack.c.l.b16 %v251
  %v1144 = vunpack.c.h.b16 %v251
  %v1145 = vunpack.c.l.b16 %v252
  %v1146 = vunpack.c.h.b16 %v252
  %v1147 = vunpack.c.l.b16 %v253
  %v1148 = vunpack.c.h.b16 %v253
  %v1149 = vunpack.c.l.b16 %v254
  %v1150 = vunpack.c.h.b16 %v254
  %v1151 = vunpack.c.l.b16 %v255
  %v1152 = vunpack.c.h.b16 %v255
  %v1153 = vunpack.c.l.b16 %v256
  %v1154 = vunpack.c.h.b16 %v256
  %v1155 = vunpack.c.l.b16 %v257
  %v1156 = vunpack.c.h.b16 %v257
  %v1157 = vunpack.c.l.b16 %v258
  %v1158 = vunpack.c.h.b16 %v258
  %v1159 = vunpack.c.l.b16 %v259
  %v1160 = vunpack.c.h.b16 %v259
  %v1161 = vunpack.c.l.b16 %v260
  %v1162 = vunpack.c.h.b16 %v260
  %v1163 = vunpack.c.l.b16 %v261
  %v1164 = vunpack.c.h.b16 %v261
  %v1165 = vunpack.c.l.b16 %v262
  %v1166 = vunpack.c.h.b16 %v262
  %v1167 = vunpack.c.l.b16 %v263
  %v1168 = vunpack.c.h.b16 %v263
  %v1169 = vunpack.c.l.b16 %v264
  %v1170 = vunpack.c.h.b16 %v264
  %v1171 = vunpack.c.l.b16 %v265
  %v1172 = vunpack.c.h.b16 %v265
  %v1173 = vunpack.c.l.b16 %v266
  %v1174 = vunpack.c.h.b16 %v266
  %v1175 = vunpack.c.l.b16 %v267
  %v1176 = vunpack.c.h.b16 %v267
  %v1177 = vunpack.c.l.b16 %v268
  %v1178 = vunpack.c.h.b16 %v268
  %v1179 = vunpack.c.l.b16 %v269
  %v1180 = vunpack.c.h.b16 %v269
  %v1181 = vunpack.c.l.b16 %v270
  %v1182 = vunpack.c.h.b16 %v270
  %v1183 = vunpack.c.l.b16 %v271
  %v1184 = vunpack.c.h.b16 %v271
  %v1185 = vunpack.c.l.b16 %v272
  %v1186 = vunpack.c.h.b16 %v272
  %v1187 = vunpack.c.l.b16 %v273
  %v1188 = vunpack.c.h.b16 %v273
  %v1189 = vunpack.c.l.b16 %v274
  %v1190 = vunpack.c.h.b16 %v274
  %v1191 = vunpack.c.l.b16 %v275
  %v1192 = vunpack.c.h.b16 %v275
  %v1193 = vunpack.c.l.b16 %v276
  %v1194 = vunpack.c.h.b16 %v276
  %v1195 = vunpack.c.l.b16 %v277
  %v1196 = vunpack.c.h.b16 %v277
  %v1197 = vunpack.c.l.b16 %v278
  %v1198 = vunpack.c.h.b16 %v278
  %v1199 = vunpack.c.l.b16 %v279
  %v1200 = vunpack.c.h.b16 %v279
  %v1201 = vunpack.c.l.b16 %v280
  %v1202 = vunpack.c.h.b16 %v280
  %v1203 = vunpack.c.l.b16 %v281
  %v1204 = vunpack.c.h.b16 %v281
  %v1205 = vunpack.c.l.b16 %v282
  %v1206 = vunpack.c.h.b16 %v282
  %v1207 = vunpack.c.l.b16 %v283
  %v1208 = vunpack.c.h.b16 %v283
  %v1209 = vunpack.c.l.b16 %v284
  %v1210 = vunpack.c.h.b16 %v284
  %v1211 = vunpack.c.l.b16 %v285
  %v1212 = vunpack.c.h.b16 %v285
  %v1213 = vunpack.c.l.b16 %v286
  %v1214 = vunpack.c.h.b16 %v286
  %v1215 = vunpack.c.l.b16 %v287
  %v1216 = vunpack.c.h.b16 %v287
  %v1217 = vunpack.c.l.b16 %v288
  %v1218 = vunpack.c.h.b16 %v288
  %v1219 = vunpack.c.l.b16 %v289
  %v1220 = vunpack.c.h.b16 %v289
  %v1221 = vunpack.c.l.b16 %v290
  %v1222 = vunpack.c.h.b16 %v290
  %v1223 = vunpack.c.l.b16 %v291
  %v1224 = vunpack.c.h.b16 %v291
  %v1225 = vunpack.c.l.b16 %v292
  %v1226 = vunpack.c.h.b16 %v292
  %v1227 = vunpack.c.l.b16 %v293
  %v1228 = vunpack.c.h.b16 %v293
  %v1229 = vunpack.c.l.b16 %v294
  %v1230 = vunpack.c.h.b16 %v294
  %v1231 = vunpack.c.l.b16 %v295
  %v1232 = vunpack.c.h.b16 %v295
  %v1233 = vunpack.c.l.b16 %v296
  %v1234 = vunpack.c.h.b16 %v296
  %v1235 = vunpack.c.l.b16 %v297
  %v1236 = vunpack.c.h.b16 %v297
  %v1237 = vunpack.c.l.b16 %v298
  %v1238 = vunpack.c.h.b16 %v298
  %v1239 = vunpack.c.l.b16 %v299
  %v1240 = vunpack.c.h.b16 %v299
  %v1241 = vunpack.c.l.b16 %v300
  %v1242 = vunpack.c.h.b16 %v300
  %v1243 = vunpack.c.l.b16 %v301
  %v1244 = vunpack.c.h.b16 %v301
  %v1245 = vunpack.c.l.b16 %v302
  %v1246 = vunpack.c.h.b16 %v302
  %v1247 = vunpack.c.l.b16 %v303
  %v1248 = vunpack.c.h.b16 %v303
  %v1249 = vunpack.c.l.b16 %v304
  %v1250 = vunpack.c.h.b16 %v304
  %v1251 = vunpack.c.l.b16 %v305
  %v1252 = vunpack.c.h.b16 %v305
  %v1253 = vunpack.c.l.b16 %v306
  %v1254 = vunpack.c.h.b16 %v306
  %v1255 = vunpack.c.l.b16 %v307
  %v1256 = vunpack.c.h.b16 %v307
  %v1257 = vunpack.c.l.b16 %v308
  %v1258 = vunpack.c.h.b16 %v308
  %v1259 = vunpack.c.l.b16 %v309
  %v1260 = vunpack.c.h.b16 %v309
  %v1261 = vunpack.c.l.b16 %v310
  %v1262 = vunpack.c.h.b16 %v310
  %v1263 = vunpack.c.l.b16 %v311
  %v1264 = vunpack.c.h.b16 %v311
  %v1265 = vunpack.c.l.b16 %v312
  %v1266 = vunpack.c.h.b16 %v312
  %v1267 = vunpack.c.l.b16 %v313
  %v1268 = vunpack.c.h.b16 %v313
  %v1269 = vunpack.c.l.b16 %v314
  %v1270 = vunpack.c.h.b16 %v314
  %v1271 = vunpack.c.l.b16 %v315
  %v1272 = vunpack.c.h.b16 %v315
  %v1273 = vunpack.c.l.b16 %v316
  %v1274 = vunpack.c.h.b16 %v316
  %v1275 = vunpack.c.l.b16 %v317
  %v1276 = vunpack.c.h.b16 %v317
  %v1277 = vunpack.c.l.b16 %v318
  %v1278 = vunpack.c.h.b16 %v318
  %v1279 = vunpack.c.l.b16 %v319
  %v1280 = vunpack.c.h.b16 %v319
  %v1281 = vunpack.c.l.b16 %v320
  %v1282 = vunpack.c.h.b16 %v320
  %v1283 = vunpack.c.l.b16 %v321
  %v1284 = vunpack.c.h.b16 %v321
  %v1285 = vunpack.c.l.b16 %v322
  %v1286 = vunpack.c.h.b16 %v322
  %v1287 = vunpack.c.l.b16 %v323
  %v1288 = vunpack.c.h.b16 %v323
  %v1289 = vunpack.c.l.b16 %v324
  %v1290 = vunpack.c.h.b16 %v324
  %v1291 = vunpack.c.l.b16 %v325
  %v1292 = vunpack.c.h.b16 %v325
  %v1293 = vunpack.c.l.b16 %v326
  %v1294 = vunpack.c.h.b16 %v326
  %v1295 = vunpack.c.l.b16 %v327
  %v1296 = vunpack.c.h.b16 %v327
  %v1297 = vunpack.c.l.b16 %v328
  %v1298 = vunpack.c.h.b16 %v328
  %v1299 = vunpack.c.l.b16 %v329
  %v1300 = vunpack.c.h.b16 %v329
  %v1301 = vunpack.c.l.b16 %v330
  %v1302 = vunpack.c.h.b16 %v330
  %v1303 = vunpack.c.l.b16 %v331
  %v1304 = vunpack.c.h.b16 %v331
  %v1305 = vunpack.c.l.b16 %v332
  %v1306 = vunpack.c.h.b16 %v332
  %v1307 = vunpack.c.l.b16 %v333
  %v1308 = vunpack.c.h.b16 %v333
  %v1309 = vunpack.c.l.b16 %v334
  %v1310 = vunpack.c.h.b16 %v334
  %v1311 = vunpack.c.l.b16 %v335
  %v1312 = vunpack.c.h.b16 %v335
  %v1313 = vunpack.c.l.b16 %v336
  %v1314 = vunpack.c.h.b16 %v336
  %v1315 = vunpack.c.l.b16 %v337
  %v1316 = vunpack.c.h.b16 %v337
  %v1317 = vunpack.c.l.b16 %v338
  %v1318 = vunpack.c.h.b16 %v338
  %v1319 = vunpack.c.l.b16 %v339
  %v1320 = vunpack.c.h.b16 %v339
  %v1321 = vunpack.c.l.b16 %v340
  %v1322 = vunpack.c.h.b16 %v340
  %v1323 = vunpack.c.l.b16 %v341
  %v1324 = vunpack.c.h.b16 %v341
  %v1325 = vunpack.c.l.b16 %v342
  %v1326 = vunpack.c.h.b16 %v342
  %v1327 = vunpack.c.l.b16 %v343
  %v1328 = vunpack.c.h.b16 %v343
  %v1329 = vunpack.c.l.b16 %v344
  %v1330 = vunpack.c.h.b16 %v344
  %v1331 = vunpack.c.l.b16 %v345
  %v1332 = vunpack.c.h.b16 %v345
  %v1333 = vunpack.c.l.b16 %v346
  %v1334 = vunpack.c.h.b16 %v346
  %v1335 = vunpack.c.l.b16 %v347
  %v1336 = vunpack.c.h.b16 %v347
  %v1337 = vunpack.c.l.b16 %v348
  %v1338 = vunpack.c.h.b16 %v348
  %v1339 = vunpack.c.l.b16 %v349
  %v1340 = vunpack.c.h.b16 %v349
  %v1341 = vunpack.c.l.b16 %v350
  %v1342 = vunpack.c.h.b16 %v350
  %v1343 = vunpack.c.l.b16 %v351
  %v1344 = vunpack.c.h.b16 %v351
  %v1345 = vunpack.c.l.b16 %v352
  %v1346 = vunpack.c.h.b16 %v352
  %v1347 = vunpack.c.l.b16 %v353
  %v1348 = vunpack.c.h.b16 %v353
  %v1349 = vunpack.c.l.b16 %v354
  %v1350 = vunpack.c.h.b16 %v354
  %v1351 = vunpack.c.l.b16 %v355
  %v1352 = vunpack.c.h.b16 %v355
  %v1353 = vunpack.c.l.b16 %v356
  %v1354 = vunpack.c.h.b16 %v356
  %v1355 = vunpack.c.l.b16 %v357
  %v1356 = vunpack.c.h.b16 %v357
  %v1357 = vunpack.c.l.b16 %v358
  %v1358 = vunpack.c.h.b16 %v358
  %v1359 = vunpack.c.l.b16 %v359
  %v1360 = vunpack.c.h.b16 %v359
  %v1361 = vunpack.c.l.b16 %v360
  %v1362 = vunpack.c.h.b16 %v360
  %v1363 = vunpack.c.l.b16 %v361
  %v1364 = vunpack.c.h.b16 %v361
  %v1365 = vunpack.c.l.b16 %v362
  %v1366 = vunpack.c.h.b16 %v362
  %v1367 = vunpack.c.l.b16 %v363
  %v1368 = vunpack.c.h.b16 %v363
  %v1369 = vunpack.c.l.b16 %v364
  %v1370 = vunpack.c.h.b16 %v364
  %v1371 = vunpack.c.l.b16 %v365
  %v1372 = vunpack.c.h.b16 %v365
  %v1373 = vunpack.c.l.b16 %v366
  %v1374 = vunpack.c.h.b16 %v366
  %v1375 = vunpack.c.l.b16 %v367
  %v1376 = vunpack.c.h.b16 %v367
  %v1377 = vunpack.c.l.b16 %v368
  %v1378 = vunpack.c.h.b16 %v368
  %v1379 = vunpack.c.l.b16 %v369
  %v1380 = vunpack.c.h.b16 %v369
  %v1381 = vunpack.c.l.b16 %v370
  %v1382 = vunpack.c.h.b16 %v370
  %v1383 = vunpack.c.l.b16 %v371
  %v1384 = vunpack.c.h.b16 %v371
  %v1385 = vunpack.c.l.b16 %v372
  %v1386 = vunpack.c.h.b16 %v372
  %v1387 = vunpack.c.l.b16 %v373
  %v1388 = vunpack.c.h.b16 %v373
  %v1389 = vunpack.c.l.b16 %v374
  %v1390 = vunpack.c.h.b16 %v374
  %v1391 = vunpack.c.l.b16 %v375
  %v1392 = vunpack.c.h.b16 %v375
  %v1393 = vunpack.c.l.b16 %v376
  %v1394 = vunpack.c.h.b16 %v376
  %v1395 = vunpack.c.l.b16 %v377
  %v1396 = vunpack.c.h.b16 %v377
  %v1397 = vunpack.c.l.b16 %v378
  %v1398 = vunpack.c.h.b16 %v378
  %v1399 = vunpack.c.l.b16 %v379
  %v1400 = vunpack.c.h.b16 %v379
  %v1401 = vunpack.c.l.b16 %v380
  %v1402 = vunpack.c.h.b16 %v380
  %v1403 = vunpack.c.l.b16 %v381
  %v1404 = vunpack.c.h.b16 %v381
  %v1405 = vunpack.c.l.b16 %v382
  %v1406 = vunpack.c.h.b16 %v382
  %v1407 = vunpack.c.l.b16 %v383
  %v1408 = vunpack.c.h.b16 %v383
  %v1409 = vunpack.c.l.b16 %v384
  %v1410 = vunpack.c.h.b16 %v384
  %v1411 = vunpack.c.l.b16 %v385
  %v1412 = vunpack.c.h.b16 %v385
  %v1413 = vunpack.c.l.b16 %v386
  %v1414 = vunpack.c.h.b16 %v386
  %v1415 = vunpack.c.l.b16 %v387
  %v1416 = vunpack.c.h.b16 %v387
  %v1417 = vunpack.c.l.b16 %v388
  %v1418 = vunpack.c.h.b16 %v388
  %v1419 = vunpack.c.l.b16 %v389
  %v1420 = vunpack.c.h.b16 %v389
  %v1421 = vunpack.c.l.b16 %v390
  %v1422 = vunpack.c.h.b16 %v390
  %v1423 = vunpack.c.l.b16 %v391
  %v1424 = vunpack.c.h.b16 %v391
  %v1425 = vunpack.c.l.b16 %v392
  %v1426 = vunpack.c.h.b16 %v392
  %v1427 = vunpack.c.l.b16 %v393
  %v1428 = vunpack.c.h.b16 %v393
  %v1429 = vunpack.c.l.b16 %v394
  %v1430 = vunpack.c.h.b16 %v394
  %v1431 = vunpack.c.l.b16 %v395
  %v1432 = vunpack.c.h.b16 %v395
  %v1433 = vunpack.c.l.b16 %v396
  %v1434 = vunpack.c.h.b16 %v396
  %v1435 = vunpack.c.l.b16 %v397
  %v1436 = vunpack.c.h.b16 %v397
  %v1437 = vunpack.c.l.b16 %v398
  %v1438 = vunpack.c.h.b16 %v398
  %v1439 = vunpack.c.l.b16 %v399
  %v1440 = vunpack.c.h.b16 %v399
  %v1441 = vunpack.c.l.b16 %v400
  %v1442 = vunpack.c.h.b16 %v400
  %v1443 = vunpack.c.l.b16 %v401
  %v1444 = vunpack.c.h.b16 %v401
  %v1445 = vunpack.c.l.b16 %v402
  %v1446 = vunpack.c.h.b16 %v402
  %v1447 = vunpack.c.l.b16 %v403
  %v1448 = vunpack.c.h.b16 %v403
  %v1449 = vunpack.c.l.b16 %v404
  %v1450 = vunpack.c.h.b16 %v404
  %v1451 = vunpack.c.l.b16 %v405
  %v1452 = vunpack.c.h.b16 %v405
  %v1453 = vunpack.c.l.b16 %v406
  %v1454 = vunpack.c.h.b16 %v406
  %v1455 = vunpack.c.l.b16 %v407
  %v1456 = vunpack.c.h.b16 %v407
  %v1457 = vunpack.c.l.b16 %v408
  %v1458 = vunpack.c.h.b16 %v408
  %v1459 = vunpack.c.l.b16 %v409
  %v1460 = vunpack.c.h.b16 %v409
  %v1461 = vunpack.c.l.b16 %v410
  %v1462 = vunpack.c.h.b16 %v410
  %v1463 = vunpack.c.l.b16 %v411
  %v1464 = vunpack.c.h.b16 %v411
  %v1465 = vunpack.c.l.b16 %v412
  %v1466 = vunpack.c.h.b16 %v412
  %v1467 = vunpack.c.l.b16 %v413
  %v1468 = vunpack.c.h.b16 %v413
  %v1469 = vunpack.c.l.b16 %v414
  %v1470 = vunpack.c.h.b16 %v414
  %v1471 = vunpack.c.l.b16 %v415
  %v1472 = vunpack.c.h.b16 %v415
  %v1473 = vunpack.c.l.b16 %v416
  %v1474 = vunpack.c.h.b16 %v416
  %v1475 = vunpack.c.l.b16 %v417
  %v1476 = vunpack.c.h.b16 %v417
  %v1477 = vunpack.c.l.b16 %v418
  %v1478 = vunpack.c.h.b16 %v418
  %v1479 = vunpack.c.l.b16 %v419
  %v1480 = vunpack.c.h.b16 %v419
  %v1481 = vunpack.c.l.b16 %v420
  %v1482 = vunpack.c.h.b16 %v420
  %v1483 = vpack.c.b16 %v785, %v783
  %v1484 = vpack.c.b16 %v786, %v784
  %v1485 = vpack.c.b16 %v789, %v787
  %v1486 = vpack.c.b16 %v790, %v788
  %v1487 = vpack.c.b16 %v793, %v791
  %v1488 = vpack.c.b16 %v794, %v792
  %v1489 = vpack.c.b16 %v797, %v795
  %v1490 = vpack.c.b16 %v798, %v796
  %v1491 = vpack.c.b16 %v801, %v799
  %v1492 = vpack.c.b16 %v802, %v800
  %v1493 = vpack.c.b16 %v805, %v803
  %v1494 = vpack.c.b16 %v806, %v804
  %v1495 = vpack.c.b16 %v809, %v807
  %v1496 = vpack.c.b16 %v810, %v808
  %v1497 = vpack.c.b16 %v813, %v811
  %v1498 = vpack.c.b16 %v814, %v812
  %v1499 = vpack.c.b16 %v817, %v815
  %v1500 = vpack.c.b16 %v818, %v816
  %v1501 = vpack.c.b16 %v821, %v819
  %v1502 = vpack.c.b16 %v822, %v820
  %v1503 = vpack.c.b16 %v825, %v823
  %v1504 = vpack.c.b16 %v826, %v824
  %v1505 = vpack.c.b16 %v829, %v827
  %v1506 = vpack.c.b16 %v830, %v828
  %v1507 = vpack.c.b16 %v833, %v831
  %v1508 = vpack.c.b16 %v834, %v832
  %v1509 = vpack.c.b16 %v837, %v835
  %v1510 = vpack.c.b16 %v838, %v836
  %v1511 = vpack.c.b16 %v841, %v839
  %v1512 = vpack.c.b16 %v842, %v840
  %v1513 = vpack.c.b16 %v845, %v843
  %v1514 = vpack.c.b16 %v846, %v844
  %v1515 = vpack.c.b16 %v849, %v847
  %v1516 = vpack.c.b16 %v850, %v848
  %v1517 = vpack.c.b16 %v853, %v851
  %v1518 = vpack.c.b16 %v854, %v852
  %v1519 = vpack.c.b16 %v857, %v855
  %v1520 = vpack.c.b16 %v858, %v856
  %v1521 = vpack.c.b16 %v861, %v859
  %v1522 = vpack.c.b16 %v862, %v860
  %v1523 = vpack.c.b16 %v865, %v863
  %v1524 = vpack.c.b16 %v866, %v864
  %v1525 = vpack.c.b16 %v869, %v867
  %v1526 = vpack.c.b16 %v870, %v868
  %v1527 = vpack.c.b16 %v873, %v871
  %v1528 = vpack.c.b16 %v874, %v872
  %v1529 = vpack.c.b16 %v877, %v875
  %v1530 = vpack.c.b16 %v878, %v876
  %v1531 = vpack.c.b16 %v881, %v879
  %v1532 = vpack.c.b16 %v882, %v880
  %v1533 = vpack.c.b16 %v885, %v883
  %v1534 = vpack.c.b16 %v886, %v884
  %v1535 = vpack.c.b16 %v889, %v887
  %v1536 = vpack.c.b16 %v890, %v888
  %v1537 = vpack.c.b16 %v893, %v891
  %v1538 = vpack.c.b16 %v894, %v892
  %v1539 = vpack.c.b16 %v897, %v895
  %v1540 = vpack.c.b16 %v898, %v896
  %v1541 = vpack.c.b16 %v901, %v899
  %v1542 = vpack.c.b16 %v902, %v900
  %v1543 = vpack.c.b16 %v905, %v903
  %v1544 = vpack.c.b16 %v906, %v904
  %v1545 = vpack.c.b16 %v909, %v907
  %v1546 = vpack.c.b16 %v910, %v908
  %v1547 = vpack.c.b16 %v913, %v911
  %v1548 = vpack.c.b16 %v914, %v912
  %v1549 = vpack.c.b16 %v917, %v915
  %v1550 = vpack.c.b16 %v918, %v916
  %v1551 = vpack.c.b16 %v921, %v919
  %v1552 = vpack.c.b16 %v922, %v920
  %v1553 = vpack.c.b16 %v925, %v923
  %v1554 = vpack.c.b16 %v926, %v924
  %v1555 = vpack.c.b16 %v929, %v927
  %v1556 = vpack.c.b16 %v930, %v928
  %v1557 = vpack.c.b16 %v933, %v931
  %v1558 = vpack.c.b16 %v934, %v932
  %v1559 = vpack.c.b16 %v937, %v935
  %v1560 = vpack.c.b16 %v938, %v936
  %v1561 = vpack.c.b16 %v941, %v939
  %v1562 = vpack.c.b16 %v942, %v940
  %v1563 = vpack.c.b16 %v945, %v943
  %v1564 = vpack.c.b16 %v946, %v944
  %v1565 = vpack.c.b16 %v949, %v947
  %v1566 = vpack.c.b16 %v950, %v948
  %v1567 = vpack.c.b16 %v953, %v951
  %v1568 = vpack.c.b16 %v954, %v952
  %v1569 = vpack.c.b16 %v957, %v955
  %v1570 = vpack.c.b16 %v958, %v956
  %v1571 = vpack.c.b16 %v961, %v959
  %v1572 = vpack.c.b16 %v962, %v960
  %v1573 = vpack.c.b16 %v965, %v963
  %v1574 = vpack.c.b16 %v966, %v964
  %v1575 = vpack.c.b16 %v969, %v967
  %v1576 = vpack.c.b16 %v970, %v968
  %v1577 = vpack.c.b16 %v973, %v971
  %v1578 = vpack.c.b16 %v974, %v972
  %v1579 = vpack.c.b16 %v977, %v975
  %v1580 = vpack.c.b16 %v978, %v976
  %v1581 = vpack.c.b16 %v981, %v979
  %v1582 = vpack.c.b16 %v982, %v980
  %v1583 = vpack.c.b16 %v985, %v983
  %v1584 = vpack.c.b16 %v986, %v984
  %v1585 = vpack.c.b16 %v989, %v987
  %v1586 = vpack.c.b16 %v990, %v988
  %v1587 = vpack.c.b16 %v993, %v991
  %v1588 = vpack.c.b16 %v994, %v992
  %v1589 = vpack.c.b16 %v997, %v995
  %v1590 = vpack.c.b16 %v998, %v996
  %v1591 = vpack.c.b16 %v1001, %v999
  %v1592 = vpack.c.b16 %v1002, %v1000
  %v1593 = vpack.c.b16 %v1005, %v1003
  %v1594 = vpack.c.b16 %v1006, %v1004
  %v1595 = vpack.c.b16 %v1009, %v1007
  %v1596 = vpack.c.b16 %v1010, %v1008
  %v1597 = vpack.c.b16 %v1013, %v1011
  %v1598 = vpack.c.b16 %v1014, %v1012
  %v1599 = vpack.c.b16 %v1017, %v1015
  %v1600 = vpack.c.b16 %v1018, %v1016
  %v1601 = vpack.c.b16 %v1021, %v1019
  %v1602 = vpack.c.b16 %v1022, %v1020
  %v1603 = vpack.c.b16 %v1025, %v1023
  %v1604 = vpack.c.b16 %v1026, %v1024
  %v1605 = vpack.c.b16 %v1029, %v1027
  %v1606 = vpack.c.b16 %v1030, %v1028
  %v1607 = vpack.c.b16 %v1033, %v1031
  %v1608 = vpack.c.b16 %v1034, %v1032
  %v1609 = vpack.c.b16 %v1037, %v1035
  %v1610 = vpack.c.b16 %v1038, %v1036
  %v1611 = vpack.c.b16 %v1041, %v1039
  %v1612 = vpack.c.b16 %v1042, %v1040
  %v1613 = vpack.c.b16 %v1045, %v1043
  %v1614 = vpack.c.b16 %v1046, %v1044
  %v1615 = vpack.c.b16 %v1049, %v1047
  %v1616 = vpack.c.b16 %v1050, %v1048
  %v1617 = vpack.c.b16 %v1053, %v1051
  %v1618 = vpack.c.b16 %v1054, %v1052
  %v1619 = vpack.c.b16 %v1057, %v1055
  %v1620 = vpack.c.b16 %v1058, %v1056
  %v1621 = vpack.c.b16 %v1061, %v1059
  %v1622 = vpack.c.b16 %v1062, %v1060
  %v1623 = vpack.c.b16 %v1065, %v1063
  %v1624 = vpack.c.b16 %v1066, %v1064
  %v1625 = vpack.c.b16 %v1069, %v1067
  %v1626 = vpack.c.b16 %v1070, %v1068
  %v1627 = vpack.c.b16 %v1073, %v1071
  %v1628 = vpack.c.b16 %v1074, %v1072
  %v1629 = vpack.c.b16 %v1077, %v1075
  %v1630 = vpack.c.b16 %v1078, %v1076
  %v1631 = vpack.c.b16 %v1081, %v1079
  %v1632 = vpack.c.b16 %v1082, %v1080
  %v1633 = vpack.c.b16 %v1085, %v1083
  %v1634 = vpack.c.b16 %v1086, %v1084
  %v1635 = vpack.c.b16 %v1089, %v1087
  %v1636 = vpack.c.b16 %v1090, %v1088
  %v1637 = vpack.c.b16 %v1093, %v1091
  %v1638 = vpack.c.b16 %v1094, %v1092
  %v1639 = vpack.c.b16 %v1097, %v1095
  %v1640 = vpack.c.b16 %v1098, %v1096
  %v1641 = vpack.c.b16 %v1101, %v1099
  %v1642 = vpack.c.b16 %v1102, %v1100
  %v1643 = vpack.c.b16 %v1105, %v1103
  %v1644 = vpack.c.b16 %v1106, %v1104
  %v1645 = vpack.c.b16 %v1109, %v1107
  %v1646 = vpack.c.b16 %v1110, %v1108
  %v1647 = vpack.c.b16 %v1113, %v1111
  %v1648 = vpack.c.b16 %v1114, %v1112
  %v1649 = vpack.c.b16 %v1117, %v1115
  %v1650 = vpack.c.b16 %v1118, %v1116
  %v1651 = vpack.c.b16 %v1121, %v1119
  %v1652 = vpack.c.b16 %v1122, %v1120
  %v1653 = vpack.c.b16 %v1125, %v1123
  %v1654 = vpack.c.b16 %v1126, %v1124
  %v1655 = vpack.c.b16 %v1129, %v1127
  %v1656 = vpack.c.b16 %v1130, %v1128
  %v1657 = vpack.c.b16 %v1133, %v1131
  %v1658 = vpack.c.b16 %v1134, %v1132
  %v1659 = vpack.c.b16 %v1137, %v1135
  %v1660 = vpack.c.b16 %v1138, %v1136
  %v1661 = vpack.c.b16 %v1141, %v1139
  %v1662 = vpack.c.b16 %v1142, %v1140
  %v1663 = vpack.c.b16 %v1145, %v1143
  %v1664 = vpack.c.b16 %v1146, %v1144
  %v1665 = vpack.c.b16 %v1149, %v1147
  %v1666 = vpack.c.b16 %v1150, %v1148
  %v1667 = vpack.c.b16 %v1153, %v1151
  %v1668 = vpack.c.b16 %v1154, %v1152
  %v1669 = vpack.c.b16 %v1157, %v1155
  %v1670 = vpack.c.b16 %v1158, %v1156
  %v1671 = vpack.c.b16 %v1161, %v1159
  %v1672 = vpack.c.b16 %v1162, %v1160
  %v1673 = vpack.c.b16 %v1165, %v1163
  %v1674 = vpack.c.b16 %v1166, %v1164
  %v1675 = vpack.c.b16 %v1169, %v1167
  %v1676 = vpack.c.b16 %v1170, %v1168
  %v1677 = vpack.c.b16 %v1173, %v1171
  %v1678 = vpack.c.b16 %v1174, %v1172
  %v1679 = vpack.c.b16 %v1177, %v1175
  %v1680 = vpack.c.b16 %v1178, %v1176
  %v1681 = vpack.c.b16 %v1181, %v1179
  %v1682 = vpack.c.b16 %v1182, %v1180
  %v1683 = vpack.c.b16 %v1185, %v1183
  %v1684 = vpack.c.b16 %v1186, %v1184
  %v1685 = vpack.c.b16 %v1189, %v1187
  %v1686 = vpack.c.b16 %v1190, %v1188
  %v1687 = vpack.c.b16 %v1193, %v1191
  %v1688 = vpack.c.b16 %v1194, %v1192
  %v1689 = vpack.c.b16 %v1197, %v1195
  %v1690 = vpack.c.b16 %v1198, %v1196
  %v1691 = vpack.c.b16 %v1201, %v1199
  %v1692 = vpack.c.b16 %v1202, %v1200
  %v1693 = vpack.c.b16 %v1205, %v1203
  %v1694 = vpack.c.b16 %v1206, %v1204
  %v1695 = vpack.c.b16 %v1209, %v1207
  %v1696 = vpack.c.b16 %v1210, %v1208
  %v1697 = vpack.c.b16 %v1213, %v1211
  %v1698 = vpack.c.b16 %v1214, %v1212
  %v1699 = vpack.c.b16 %v1217, %v1215
  %v1700 = vpack.c.b16 %v1218, %v1216
  %v1701 = vpack.c.b16 %v1221, %v1219
  %v1702 = vpack.c.b16 %v1222, %v1220
  %v1703 = vpack.c.b16 %v1225, %v1223
  %v1704 = vpack.c.b16 %v1226, %v1224
  %v1705 = vpack.c.b16 %v1229, %v1227
  %v1706 = vpack.c.b16 %v1230, %v1228
  %v1707 = vpack.c.b16 %v1233, %v1231
  %v1708 = vpack.c.b16 %v1234, %v1232
  %v1709 = vpack.c.b16 %v1237, %v1235
  %v1710 = vpack.c.b16 %v1238, %v1236
  %v1711 = vpack.c.b16 %v1241, %v1239
  %v1712 = vpack.c.b16 %v1242, %v1240
  %v1713 = vpack.c.b16 %v1245, %v1243
  %v1714 = vpack.c.b16 %v1246, %v1244
  %v1715 = vpack.c.b16 %v1249, %v1247
  %v1716 = vpack.c.b16 %v1250, %v1248
  %v1717 = vpack.c.b16 %v1253, %v1251
  %v1718 = vpack.c.b16 %v1254, %v1252
  %v1719 = vpack.c.b16 %v1257, %v1255
  %v1720 = vpack.c.b16 %v1258, %v1256
  %v1721 = vpack.c.b16 %v1261, %v1259
  %v1722 = vpack.c.b16 %v1262, %v1260
  %v1723 = vpack.c.b16 %v1265, %v1263
  %v1724 = vpack.c.b16 %v1266, %v1264
  %v1725 = vpack.c.b16 %v1269, %v1267
  %v1726 = vpack.c.b16 %v1270, %v1268
  %v1727 = vpack.c.b16 %v1273, %v1271
  %v1728 = vpack.c.b16 %v1274, %v1272
  %v1729 = vpack.c.b16 %v1277, %v1275
  %v1730 = vpack.c.b16 %v1278, %v1276
  %v1731 = vpack.c.b16 %v1281, %v1279
  %v1732 = vpack.c.b16 %v1282, %v1280
  %v1733 = vpack.c.b16 %v1285, %v1283
  %v1734 = vpack.c.b16 %v1286, %v1284
  %v1735 = vpack.c.b16 %v1289, %v1287
  %v1736 = vpack.c.b16 %v1290, %v1288
  %v1737 = vpack.c.b16 %v1293, %v1291
  %v1738 = vpack.c.b16 %v1294, %v1292
  %v1739 = vpack.c.b16 %v1297, %v1295
  %v1740 = vpack.c.b16 %v1298, %v1296
  %v1741 = vpack.c.b16 %v1301, %v1299
  %v1742 = vpack.c.b16 %v1302, %v1300
  %v1743 = vpack.c.b16 %v1305, %v1303
  %v1744 = vpack.c.b16 %v1306, %v1304
  %v1745 = vpack.c.b16 %v1309, %v1307
  %v1746 = vpack.c.b16 %v1310, %v1308
  %v1747 = vpack.c.b16 %v1313, %v1311
  %v1748 = vpack.c.b16 %v1314, %v1312
  %v1749 = vpack.c.b16 %v1317, %v1315
  %v1750 = vpack.c.b16 %v1318, %v1316
  %v1751 = vpack.c.b16 %v1321, %v1319
  %v1752 = vpack.c.b16 %v1322, %v1320
  %v1753 = vpack.c.b16 %v1325, %v1323
  %v1754 = vpack.c.b16 %v1326, %v1324
  %v1755 = vpack.c.b16 %v1329, %v1327
  %v1756 = vpack.c.b16 %v1330, %v1328
  %v1757 = vpack.c.b16 %v1333, %v1331
  %v1758 = vpack.c.b16 %v1334, %v1332
  %v1759 = vpack.c.b16 %v1337, %v1335
  %v1760 = vpack.c.b16 %v1338, %v1336
  %v1761 = vpack.c.b16 %v1341, %v1339
  %v1762 = vpack.c.b16 %v1342, %v1340
  %v1763 = vpack.c.b16 %v1345, %v1343
  %v1764 = vpack.c.b16 %v1346, %v1344
  %v1765 = vpack.c.b16 %v1349, %v1347
  %v1766 = vpack.c.b16 %v1350, %v1348
  %v1767 = vpack.c.b16 %v1353, %v1351
  %v1768 = vpack.c.b16 %v1354, %v1352
  %v1769 = vpack.c.b16 %v1357, %v1355
  %v1770 = vpack.c.b16 %v1358, %v1356
  %v1771 = vpack.c.b16 %v1361, %v1359
  %v1772 = vpack.c.b16 %v1362, %v1360
  %v1773 = vpack.c.b16 %v1365, %v1363
  %v1774 = vpack.c.b16 %v1366, %v1364
  %v1775 = vpack.c.b16 %v1369, %v1367
  %v1776 = vpack.c.b16 %v1370, %v1368
  %v1777 = vpack.c.b16 %v1373, %v1371
  %v1778 = vpack.c.b16 %v1374, %v1372
  %v1779 = vpack.c.b16 %v1377, %v1375
  %v1780 = vpack.c.b16 %v1378, %v1376
  %v1781 = vpack.c.b16 %v1381, %v1379
  %v1782 = vpack.c.b16 %v1382, %v1380
  %v1783 = vpack.c.b16 %v1385, %v1383
  %v1784 = vpack.c.b16 %v1386, %v1384
  %v1785 = vpack.c.b16 %v1389, %v1387
  %v1786 = vpack.c.b16 %v1390, %v1388
  %v1787 = vpack.c.b16 %v1393, %v1391
  %v1788 = vpack.c.b16 %v1394, %v1392
  %v1789 = vpack.c.b16 %v1397, %v1395
  %v1790 = vpack.c.b16 %v1398, %v1396
  %v1791 = vpack.c.b16 %v1401, %v1399
  %v1792 = vpack.c.b16 %v1402, %v1400
  %v1793 = vpack.c.b16 %v1405, %v1403
  %v1794 = vpack.c.b16 %v1406, %v1404
  %v1795 = vpack.c.b16 %v1409, %v1407
  %v1796 = vpack.c.b16 %v1410, %v1408
  %v1797 = vpack.c.b16 %v1413, %v1411
  %v1798 = vpack.c.b16 %v1414, %v1412
  %v1799 = vpack.c.b16 %v1417, %v1415
  %v1800 = vpack.c.b16 %v1418, %v1416
  %v1801 = vpack.c.b16 %v1421, %v1419
  %v1802 = vpack.c.b16 %v1422, %v1420
  %v1803 = vpack.c.b16 %v1425, %v1423
  %v1804 = vpack.c.b16 %v1426, %v1424
  %v1805 = vpack.c.b16 %v1429, %v1427
  %v1806 = vpack.c.b16 %v1430, %v1428
  %v1807 = vpack.c.b16 %v1433, %v1431
  %v1808 = vpack.c.b16 %v1434, %v1432
  %v1809 = vpack.c.b16 %v1437, %v1435
  %v1810 = vpack.c.b16 %v1438, %v1436
  %v1811 = vpack.c.b16 %v1441, %v1439
  %v1812 = vpack.c.b16 %v1442, %v1440
  %v1813 = vpack.c.b16 %v1445, %v1443
  %v1814 = vpack.c.b16 %v1446, %v1444
  %v1815 = vpack.c.b16 %v1449, %v1447
  %v1816 = vpack.c.b16 %v1450, %v1448
  %v1817 = vpack.c.b16 %v1453, %v1451
  %v1818 = vpack.c.b16 %v1454, %v1452
  %v1819 = vpack.c.b16 %v1457, %v1455
  %v1820 = vpack.c.b16 %v1458, %v1456
  %v1821 = vpack.c.b16 %v1461, %v1459
  %v1822 = vpack.c.b16 %v1462, %v1460
  %v1823 = vpack.c.b16 %v1465, %v1463
  %v1824 = vpack.c.b16 %v1466, %v1464
  %v1825 = vpack.c.b16 %v1469, %v1467
  %v1826 = vpack.c.b16 %v1470, %v1468
  %v1827 = vpack.c.b16 %v1473, %v1471
  %v1828 = vpack.c.b16 %v1474, %v1472
  %v1829 = vpack.c.b16 %v1477, %v1475
  %v1830 = vpack.c.b16 %v1478, %v1476
  %v1831 = vpack.c.b16 %v1481, %v1479
  %v1832 = vpack.c.b16 %v1482, %v1480
  %vm2183 = vcmask 916480
  %v2185 = vsel %vm2183, %v70, 0
  %2187 = vmatprep.subr.bf16.mxu0 %v1484
  %2188 = vmatpush1.bf16.msra.mxu0 %v1483
  %2189 = vmatprep.subr.bf16.mxu0 %v1486
  %2190 = vmatpush1.bf16.msra.mxu0 %v1485
  %2191 = vmatprep.subr.bf16.mxu0 %v1488
  %2192 = vmatpush1.bf16.msra.mxu0 %v1487
  %2193 = vmatprep.subr.bf16.mxu0 %v1490
  %2194 = vmatpush1.bf16.msra.mxu0 %v1489
  %2195 = vmatprep.subr.bf16.mxu0 %v1492
  %2196 = vmatpush1.bf16.msra.mxu0 %v1491
  %2197 = vmatprep.subr.bf16.mxu0 %v1494
  %2198 = vmatpush1.bf16.msra.mxu0 %v1493
  %2199 = vmatprep.subr.bf16.mxu0 %v1496
  %2200 = vmatpush1.bf16.msra.mxu0 %v1495
  %2201 = vmatprep.subr.bf16.mxu0 %v1498
  %2202 = vmatpush1.bf16.msra.mxu0 %v1497
  %2203 = vmatprep.subr.bf16.mxu0 %v1500
  %2204 = vmatpush1.bf16.msra.mxu0 %v1499
  %2205 = vmatprep.subr.bf16.mxu0 %v1502
  %2206 = vmatpush1.bf16.msra.mxu0 %v1501
  %2207 = vmatprep.subr.bf16.mxu0 %v1504
  %2208 = vmatpush1.bf16.msra.mxu0 %v1503
  %2209 = vmatprep.subr.bf16.mxu0 %v1506
  %2210 = vmatpush1.bf16.msra.mxu0 %v1505
  %2211 = vmatprep.subr.bf16.mxu0 %v1508
  %2212 = vmatpush1.bf16.msra.mxu0 %v1507
  %2213 = vmatprep.subr.bf16.mxu0 %v1510
  %2214 = vmatpush1.bf16.msra.mxu0 %v1509
  %2215 = vmatprep.subr.bf16.mxu0 %v1512
  %2216 = vmatpush1.bf16.msra.mxu0 %v1511
  %2217 = vmatprep.subr.bf16.mxu0 %v1514
  %2218 = vmatpush1.bf16.msra.mxu0 %v1513
  %2219 = vmatprep.mubr.bf16.mxu0 %v50
  %2220 = vmatmul.mubr.bf16.gmra.mrb[0].mxu0 %v49
  %v2221 = vpop.f32.mrb[0].mxu0
  %v2222 = vadd.f32 %v426, %v2221
  %v2223 = vpop.f32.mrb[0].mxu0
  %v2224 = vadd.f32 %v430, %v2223
  %v2225 = vpop.f32.mrb[0].mxu0
  %v2226 = vpop.f32.mrb[0].mxu0
  %2227 = vdwg.mxu0
  %2228 = vmatprep.subr.bf16.mxu0 %v1516
  %2229 = vmatpush1.bf16.msra.mxu0 %v1515
  %2230 = vmatprep.subr.bf16.mxu0 %v1518
  %2231 = vmatpush1.bf16.msra.mxu0 %v1517
  %2232 = vmatprep.subr.bf16.mxu0 %v1520
  %2233 = vmatpush1.bf16.msra.mxu0 %v1519
  %2234 = vmatprep.subr.bf16.mxu0 %v1522
  %2235 = vmatpush1.bf16.msra.mxu0 %v1521
  %2236 = vmatprep.subr.bf16.mxu0 %v1524
  %2237 = vmatpush1.bf16.msra.mxu0 %v1523
  %2238 = vmatprep.subr.bf16.mxu0 %v1526
  %2239 = vmatpush1.bf16.msra.mxu0 %v1525
  %2240 = vmatprep.subr.bf16.mxu0 %v1528
  %2241 = vmatpush1.bf16.msra.mxu0 %v1527
  %2242 = vmatprep.subr.bf16.mxu0 %v1530
  %2243 = vmatpush1.bf16.msra.mxu0 %v1529
  %2244 = vmatprep.subr.bf16.mxu0 %v1532
  %2245 = vmatpush1.bf16.msra.mxu0 %v1531
  %2246 = vmatprep.subr.bf16.mxu0 %v1534
  %2247 = vmatpush1.bf16.msra.mxu0 %v1533
  %2248 = vmatprep.subr.bf16.mxu0 %v1536
  %2249 = vmatpush1.bf16.msra.mxu0 %v1535
  %2250 = vmatprep.subr.bf16.mxu0 %v1538
  %2251 = vmatpush1.bf16.msra.mxu0 %v1537
  %2252 = vmatprep.subr.bf16.mxu0 %v1540
  %2253 = vmatpush1.bf16.msra.mxu0 %v1539
  %2254 = vmatprep.subr.bf16.mxu0 %v1542
  %2255 = vmatpush1.bf16.msra.mxu0 %v1541
  %2256 = vmatprep.subr.bf16.mxu0 %v1544
  %2257 = vmatpush1.bf16.msra.mxu0 %v1543
  %2258 = vmatprep.subr.bf16.mxu0 %v1546
  %2259 = vmatpush1.bf16.msra.mxu0 %v1545
  %2260 = vmatprep.mubr.bf16.mxu0 %v52
  %2261 = vmatmul.mubr.bf16.gmra.mrb[0].mxu0 %v51
  %v2262 = vpop.f32.mrb[0].mxu0
  %v2263 = vadd.f32 %v2222, %v2262
  %v2264 = vpop.f32.mrb[0].mxu0
  %v2265 = vadd.f32 %v2224, %v2264
  %v2266 = vpop.f32.mrb[0].mxu0
  %v2267 = vpop.f32.mrb[0].mxu0
  %2268 = vdwg.mxu0
  %2269 = vmatprep.subr.bf16.mxu0 %v1548
  %2270 = vmatpush1.bf16.msra.mxu0 %v1547
  %2271 = vmatprep.subr.bf16.mxu0 %v1550
  %2272 = vmatpush1.bf16.msra.mxu0 %v1549
  %2273 = vmatprep.subr.bf16.mxu0 %v1552
  %2274 = vmatpush1.bf16.msra.mxu0 %v1551
  %2275 = vmatprep.subr.bf16.mxu0 %v1554
  %2276 = vmatpush1.bf16.msra.mxu0 %v1553
  %2277 = vmatprep.subr.bf16.mxu0 %v1556
  %2278 = vmatpush1.bf16.msra.mxu0 %v1555
  %2279 = vmatprep.subr.bf16.mxu0 %v1558
  %2280 = vmatpush1.bf16.msra.mxu0 %v1557
  %2281 = vmatprep.subr.bf16.mxu0 %v1560
  %2282 = vmatpush1.bf16.msra.mxu0 %v1559
  %2283 = vmatprep.subr.bf16.mxu0 %v1562
  %2284 = vmatpush1.bf16.msra.mxu0 %v1561
  %2285 = vmatprep.subr.bf16.mxu0 %v1564
  %2286 = vmatpush1.bf16.msra.mxu0 %v1563
  %2287 = vmatprep.subr.bf16.mxu0 %v1566
  %2288 = vmatpush1.bf16.msra.mxu0 %v1565
  %2289 = vmatprep.subr.bf16.mxu0 %v1568
  %2290 = vmatpush1.bf16.msra.mxu0 %v1567
  %2291 = vmatprep.subr.bf16.mxu0 %v1570
  %2292 = vmatpush1.bf16.msra.mxu0 %v1569
  %2293 = vmatprep.subr.bf16.mxu0 %v1572
  %2294 = vmatpush1.bf16.msra.mxu0 %v1571
  %2295 = vmatprep.subr.bf16.mxu0 %v1574
  %2296 = vmatpush1.bf16.msra.mxu0 %v1573
  %2297 = vmatprep.subr.bf16.mxu0 %v1576
  %2298 = vmatpush1.bf16.msra.mxu0 %v1575
  %2299 = vmatprep.subr.bf16.mxu0 %v1578
  %2300 = vmatpush1.bf16.msra.mxu0 %v1577
  %2301 = vmatprep.mubr.bf16.mxu0 %v54
  %2302 = vmatmul.mubr.bf16.gmra.mrb[0].mxu0 %v53
  %v2303 = vpop.f32.mrb[0].mxu0
  %v2304 = vadd.f32 %v2263, %v2303
  %v2305 = vpop.f32.mrb[0].mxu0
  %v2306 = vadd.f32 %v2265, %v2305
  %v2307 = vpop.f32.mrb[0].mxu0
  %v2308 = vpop.f32.mrb[0].mxu0
  %2309 = vdwg.mxu0
  %2310 = vmatprep.subr.bf16.mxu0 %v1580
  %2311 = vmatpush1.bf16.msra.mxu0 %v1579
  %2312 = vmatprep.subr.bf16.mxu0 %v1582
  %2313 = vmatpush1.bf16.msra.mxu0 %v1581
  %2314 = vmatprep.subr.bf16.mxu0 %v1584
  %2315 = vmatpush1.bf16.msra.mxu0 %v1583
  %2316 = vmatprep.subr.bf16.mxu0 %v1586
  %2317 = vmatpush1.bf16.msra.mxu0 %v1585
  %2318 = vmatprep.subr.bf16.mxu0 %v1588
  %2319 = vmatpush1.bf16.msra.mxu0 %v1587
  %2320 = vmatprep.subr.bf16.mxu0 %v1590
  %2321 = vmatpush1.bf16.msra.mxu0 %v1589
  %2322 = vmatprep.subr.bf16.mxu0 %v1592
  %2323 = vmatpush1.bf16.msra.mxu0 %v1591
  %2324 = vmatprep.subr.bf16.mxu0 %v1594
  %2325 = vmatpush1.bf16.msra.mxu0 %v1593
  %2326 = vmatprep.subr.bf16.mxu0 %v1596
  %2327 = vmatpush1.bf16.msra.mxu0 %v1595
  %2328 = vmatprep.subr.bf16.mxu0 %v1598
  %2329 = vmatpush1.bf16.msra.mxu0 %v1597
  %2330 = vmatprep.subr.bf16.mxu0 %v1600
  %2331 = vmatpush1.bf16.msra.mxu0 %v1599
  %2332 = vmatprep.subr.bf16.mxu0 %v1602
  %2333 = vmatpush1.bf16.msra.mxu0 %v1601
  %2334 = vmatprep.subr.bf16.mxu0 %v1604
  %2335 = vmatpush1.bf16.msra.mxu0 %v1603
  %2336 = vmatprep.subr.bf16.mxu0 %v1606
  %2337 = vmatpush1.bf16.msra.mxu0 %v1605
  %2338 = vmatprep.subr.bf16.mxu0 %v1608
  %2339 = vmatpush1.bf16.msra.mxu0 %v1607
  %2340 = vmatprep.subr.bf16.mxu0 %v1610
  %2341 = vmatpush1.bf16.msra.mxu0 %v1609
  %2342 = vmatprep.mubr.bf16.mxu0 %v56
  %2343 = vmatmul.mubr.bf16.gmra.mrb[0].mxu0 %v55
  %v2344 = vpop.f32.mrb[0].mxu0
  %v2345 = vadd.f32 %v2304, %v2344
  %v2346 = vpop.f32.mrb[0].mxu0
  %v2347 = vadd.f32 %v2306, %v2346
  %v2348 = vpop.f32.mrb[0].mxu0
  %v2349 = vpop.f32.mrb[0].mxu0
  %2350 = vdwg.mxu0
  %2351 = vmatprep.subr.bf16.mxu0 %v1612
  %2352 = vmatpush1.bf16.msra.mxu0 %v1611
  %2353 = vmatprep.subr.bf16.mxu0 %v1614
  %2354 = vmatpush1.bf16.msra.mxu0 %v1613
  %2355 = vmatprep.subr.bf16.mxu0 %v1616
  %2356 = vmatpush1.bf16.msra.mxu0 %v1615
  %2357 = vmatprep.subr.bf16.mxu0 %v1618
  %2358 = vmatpush1.bf16.msra.mxu0 %v1617
  %2359 = vmatprep.subr.bf16.mxu0 %v1620
  %2360 = vmatpush1.bf16.msra.mxu0 %v1619
  %2361 = vmatprep.subr.bf16.mxu0 %v1622
  %2362 = vmatpush1.bf16.msra.mxu0 %v1621
  %2363 = vmatprep.subr.bf16.mxu0 %v1624
  %2364 = vmatpush1.bf16.msra.mxu0 %v1623
  %2365 = vmatprep.subr.bf16.mxu0 %v1626
  %2366 = vmatpush1.bf16.msra.mxu0 %v1625
  %2367 = vmatprep.subr.bf16.mxu0 %v1628
  %2368 = vmatpush1.bf16.msra.mxu0 %v1627
  %2369 = vmatprep.subr.bf16.mxu0 %v1630
  %2370 = vmatpush1.bf16.msra.mxu0 %v1629
  %2371 = vmatprep.subr.bf16.mxu0 %v1632
  %2372 = vmatpush1.bf16.msra.mxu0 %v1631
  %2373 = vmatprep.subr.bf16.mxu0 %v1634
  %2374 = vmatpush1.bf16.msra.mxu0 %v1633
  %2375 = vmatprep.subr.bf16.mxu0 %v1636
  %2376 = vmatpush1.bf16.msra.mxu0 %v1635
  %2377 = vmatprep.subr.bf16.mxu0 %v1638
  %2378 = vmatpush1.bf16.msra.mxu0 %v1637
  %2379 = vmatprep.subr.bf16.mxu0 %v1640
  %2380 = vmatpush1.bf16.msra.mxu0 %v1639
  %2381 = vmatprep.subr.bf16.mxu0 %v1642
  %2382 = vmatpush1.bf16.msra.mxu0 %v1641
  %2383 = vmatprep.mubr.bf16.mxu0 %v58
  %2384 = vmatmul.mubr.bf16.gmra.mrb[0].mxu0 %v57
  %v2385 = vpop.f32.mrb[0].mxu0
  %v2386 = vadd.f32 %v2345, %v2385
  %v2387 = vpop.f32.mrb[0].mxu0
  %v2388 = vadd.f32 %v2347, %v2387
  %v2389 = vpop.f32.mrb[0].mxu0
  %v2390 = vpop.f32.mrb[0].mxu0
  %2391 = vdwg.mxu0
  %2392 = vmatprep.subr.bf16.mxu0 %v1644
  %2393 = vmatpush1.bf16.msra.mxu0 %v1643
  %2394 = vmatprep.subr.bf16.mxu0 %v1646
  %2395 = vmatpush1.bf16.msra.mxu0 %v1645
  %2396 = vmatprep.subr.bf16.mxu0 %v1648
  %2397 = vmatpush1.bf16.msra.mxu0 %v1647
  %2398 = vmatprep.subr.bf16.mxu0 %v1650
  %2399 = vmatpush1.bf16.msra.mxu0 %v1649
  %2400 = vmatprep.subr.bf16.mxu0 %v1652
  %2401 = vmatpush1.bf16.msra.mxu0 %v1651
  %2402 = vmatprep.subr.bf16.mxu0 %v1654
  %2403 = vmatpush1.bf16.msra.mxu0 %v1653
  %2404 = vmatprep.subr.bf16.mxu0 %v1656
  %2405 = vmatpush1.bf16.msra.mxu0 %v1655
  %2406 = vmatprep.subr.bf16.mxu0 %v1658
  %2407 = vmatpush1.bf16.msra.mxu0 %v1657
  %2408 = vmatprep.subr.bf16.mxu0 %v1660
  %2409 = vmatpush1.bf16.msra.mxu0 %v1659
  %2410 = vmatprep.subr.bf16.mxu0 %v1662
  %2411 = vmatpush1.bf16.msra.mxu0 %v1661
  %2412 = vmatprep.subr.bf16.mxu0 %v1664
  %2413 = vmatpush1.bf16.msra.mxu0 %v1663
  %2414 = vmatprep.subr.bf16.mxu0 %v1666
  %2415 = vmatpush1.bf16.msra.mxu0 %v1665
  %2416 = vmatprep.subr.bf16.mxu0 %v1668
  %2417 = vmatpush1.bf16.msra.mxu0 %v1667
  %2418 = vmatprep.subr.bf16.mxu0 %v1670
  %2419 = vmatpush1.bf16.msra.mxu0 %v1669
  %2420 = vmatprep.subr.bf16.mxu0 %v1672
  %2421 = vmatpush1.bf16.msra.mxu0 %v1671
  %2422 = vmatprep.subr.bf16.mxu0 %v1674
  %2423 = vmatpush1.bf16.msra.mxu0 %v1673
  %2424 = vmatprep.mubr.bf16.mxu0 %v60
  %2425 = vmatmul.mubr.bf16.gmra.mrb[0].mxu0 %v59
  %v2426 = vpop.f32.mrb[0].mxu0
  %v2427 = vadd.f32 %v2386, %v2426
  %v2428 = vpop.f32.mrb[0].mxu0
  %v2429 = vadd.f32 %v2388, %v2428
  %v2430 = vpop.f32.mrb[0].mxu0
  %v2431 = vpop.f32.mrb[0].mxu0
  %2432 = vdwg.mxu0
  %2433 = vmatprep.subr.bf16.mxu0 %v1676
  %2434 = vmatpush1.bf16.msra.mxu0 %v1675
  %2435 = vmatprep.subr.bf16.mxu0 %v1678
  %2436 = vmatpush1.bf16.msra.mxu0 %v1677
  %2437 = vmatprep.subr.bf16.mxu0 %v1680
  %2438 = vmatpush1.bf16.msra.mxu0 %v1679
  %2439 = vmatprep.subr.bf16.mxu0 %v1682
  %2440 = vmatpush1.bf16.msra.mxu0 %v1681
  %2441 = vmatprep.subr.bf16.mxu0 %v1684
  %2442 = vmatpush1.bf16.msra.mxu0 %v1683
  %2443 = vmatprep.subr.bf16.mxu0 %v1686
  %2444 = vmatpush1.bf16.msra.mxu0 %v1685
  %2445 = vmatprep.subr.bf16.mxu0 %v1688
  %2446 = vmatpush1.bf16.msra.mxu0 %v1687
  %2447 = vmatprep.subr.bf16.mxu0 %v1690
  %2448 = vmatpush1.bf16.msra.mxu0 %v1689
  %2449 = vmatprep.subr.bf16.mxu0 %v1692
  %2450 = vmatpush1.bf16.msra.mxu0 %v1691
  %2451 = vmatprep.subr.bf16.mxu0 %v1694
  %2452 = vmatpush1.bf16.msra.mxu0 %v1693
  %2453 = vmatprep.subr.bf16.mxu0 %v1696
  %2454 = vmatpush1.bf16.msra.mxu0 %v1695
  %2455 = vmatprep.subr.bf16.mxu0 %v1698
  %2456 = vmatpush1.bf16.msra.mxu0 %v1697
  %2457 = vmatprep.subr.bf16.mxu0 %v1700
  %2458 = vmatpush1.bf16.msra.mxu0 %v1699
  %2459 = vmatprep.subr.bf16.mxu0 %v1702
  %2460 = vmatpush1.bf16.msra.mxu0 %v1701
  %2461 = vmatprep.subr.bf16.mxu0 %v1704
  %2462 = vmatpush1.bf16.msra.mxu0 %v1703
  %2463 = vmatprep.subr.bf16.mxu0 %v1706
  %2464 = vmatpush1.bf16.msra.mxu0 %v1705
  %2465 = vmatprep.mubr.bf16.mxu0 %v62
  %2466 = vmatmul.mubr.bf16.gmra.mrb[0].mxu0 %v61
  %v2467 = vpop.f32.mrb[0].mxu0
  %v2468 = vadd.f32 %v2427, %v2467
  %v2469 = vpop.f32.mrb[0].mxu0
  %v2470 = vadd.f32 %v2429, %v2469
  %v2471 = vpop.f32.mrb[0].mxu0
  %v2472 = vpop.f32.mrb[0].mxu0
  %2473 = vdwg.mxu0
  %2474 = vmatprep.subr.bf16.mxu0 %v1708
  %2475 = vmatpush1.bf16.msra.mxu0 %v1707
  %2476 = vmatprep.subr.bf16.mxu0 %v1710
  %2477 = vmatpush1.bf16.msra.mxu0 %v1709
  %2478 = vmatprep.subr.bf16.mxu0 %v1712
  %2479 = vmatpush1.bf16.msra.mxu0 %v1711
  %2480 = vmatprep.subr.bf16.mxu0 %v1714
  %2481 = vmatpush1.bf16.msra.mxu0 %v1713
  %2482 = vmatprep.subr.bf16.mxu0 %v1716
  %2483 = vmatpush1.bf16.msra.mxu0 %v1715
  %2484 = vmatprep.subr.bf16.mxu0 %v1718
  %2485 = vmatpush1.bf16.msra.mxu0 %v1717
  %2486 = vmatprep.subr.bf16.mxu0 %v1720
  %2487 = vmatpush1.bf16.msra.mxu0 %v1719
  %2488 = vmatprep.subr.bf16.mxu0 %v1722
  %2489 = vmatpush1.bf16.msra.mxu0 %v1721
  %2490 = vmatprep.subr.bf16.mxu0 %v1724
  %2491 = vmatpush1.bf16.msra.mxu0 %v1723
  %2492 = vmatprep.subr.bf16.mxu0 %v1726
  %2493 = vmatpush1.bf16.msra.mxu0 %v1725
  %2494 = vmatprep.subr.bf16.mxu0 %v1728
  %2495 = vmatpush1.bf16.msra.mxu0 %v1727
  %2496 = vmatprep.subr.bf16.mxu0 %v1730
  %2497 = vmatpush1.bf16.msra.mxu0 %v1729
  %2498 = vmatprep.subr.bf16.mxu0 %v1732
  %2499 = vmatpush1.bf16.msra.mxu0 %v1731
  %2500 = vmatprep.subr.bf16.mxu0 %v1734
  %2501 = vmatpush1.bf16.msra.mxu0 %v1733
  %2502 = vmatprep.subr.bf16.mxu0 %v1736
  %2503 = vmatpush1.bf16.msra.mxu0 %v1735
  %2504 = vmatprep.subr.bf16.mxu0 %v1738
  %2505 = vmatpush1.bf16.msra.mxu0 %v1737
  %2506 = vmatprep.mubr.bf16.mxu0 %v64
  %2507 = vmatmul.mubr.bf16.gmra.mrb[0].mxu0 %v63
  %v2508 = vpop.f32.mrb[0].mxu0
  %v2509 = vadd.f32 %v2468, %v2508
  %v2510 = vpop.f32.mrb[0].mxu0
  %v2511 = vadd.f32 %v2470, %v2510
  %v2512 = vpop.f32.mrb[0].mxu0
  %v2513 = vpop.f32.mrb[0].mxu0
  %2514 = vdwg.mxu0
  %2515 = vmatprep.subr.bf16.mxu0 %v1740
  %2516 = vmatpush1.bf16.msra.mxu0 %v1739
  %2517 = vmatprep.subr.bf16.mxu0 %v1742
  %2518 = vmatpush1.bf16.msra.mxu0 %v1741
  %2519 = vmatprep.subr.bf16.mxu0 %v1744
  %2520 = vmatpush1.bf16.msra.mxu0 %v1743
  %2521 = vmatprep.subr.bf16.mxu0 %v1746
  %2522 = vmatpush1.bf16.msra.mxu0 %v1745
  %2523 = vmatprep.subr.bf16.mxu0 %v1748
  %2524 = vmatpush1.bf16.msra.mxu0 %v1747
  %2525 = vmatprep.subr.bf16.mxu0 %v1750
  %2526 = vmatpush1.bf16.msra.mxu0 %v1749
  %2527 = vmatprep.subr.bf16.mxu0 %v1752
  %2528 = vmatpush1.bf16.msra.mxu0 %v1751
  %2529 = vmatprep.subr.bf16.mxu0 %v1754
  %2530 = vmatpush1.bf16.msra.mxu0 %v1753
  %2531 = vmatprep.subr.bf16.mxu0 %v1756
  %2532 = vmatpush1.bf16.msra.mxu0 %v1755
  %2533 = vmatprep.subr.bf16.mxu0 %v1758
  %2534 = vmatpush1.bf16.msra.mxu0 %v1757
  %2535 = vmatprep.subr.bf16.mxu0 %v1760
  %2536 = vmatpush1.bf16.msra.mxu0 %v1759
  %2537 = vmatprep.subr.bf16.mxu0 %v1762
  %2538 = vmatpush1.bf16.msra.mxu0 %v1761
  %2539 = vmatprep.subr.bf16.mxu0 %v1764
  %2540 = vmatpush1.bf16.msra.mxu0 %v1763
  %2541 = vmatprep.subr.bf16.mxu0 %v1766
  %2542 = vmatpush1.bf16.msra.mxu0 %v1765
  %2543 = vmatprep.subr.bf16.mxu0 %v1768
  %2544 = vmatpush1.bf16.msra.mxu0 %v1767
  %2545 = vmatprep.subr.bf16.mxu0 %v1770
  %2546 = vmatpush1.bf16.msra.mxu0 %v1769
  %2547 = vmatprep.mubr.bf16.mxu0 %v66
  %2548 = vmatmul.mubr.bf16.gmra.mrb[0].mxu0 %v65
  %v2549 = vpop.f32.mrb[0].mxu0
  %v2550 = vadd.f32 %v2509, %v2549
  %v2551 = vpop.f32.mrb[0].mxu0
  %v2552 = vadd.f32 %v2511, %v2551
  %v2553 = vpop.f32.mrb[0].mxu0
  %v2554 = vpop.f32.mrb[0].mxu0
  %2555 = vdwg.mxu0
  %2556 = vmatprep.subr.bf16.mxu0 %v1772
  %2557 = vmatpush1.bf16.msra.mxu0 %v1771
  %2558 = vmatprep.subr.bf16.mxu0 %v1774
  %2559 = vmatpush1.bf16.msra.mxu0 %v1773
  %2560 = vmatprep.subr.bf16.mxu0 %v1776
  %2561 = vmatpush1.bf16.msra.mxu0 %v1775
  %2562 = vmatprep.subr.bf16.mxu0 %v1778
  %2563 = vmatpush1.bf16.msra.mxu0 %v1777
  %2564 = vmatprep.subr.bf16.mxu0 %v1780
  %2565 = vmatpush1.bf16.msra.mxu0 %v1779
  %2566 = vmatprep.subr.bf16.mxu0 %v1782
  %2567 = vmatpush1.bf16.msra.mxu0 %v1781
  %2568 = vmatprep.subr.bf16.mxu0 %v1784
  %2569 = vmatpush1.bf16.msra.mxu0 %v1783
  %2570 = vmatprep.subr.bf16.mxu0 %v1786
  %2571 = vmatpush1.bf16.msra.mxu0 %v1785
  %2572 = vmatprep.subr.bf16.mxu0 %v1788
  %2573 = vmatpush1.bf16.msra.mxu0 %v1787
  %2574 = vmatprep.subr.bf16.mxu0 %v1790
  %2575 = vmatpush1.bf16.msra.mxu0 %v1789
  %2576 = vmatprep.subr.bf16.mxu0 %v1792
  %2577 = vmatpush1.bf16.msra.mxu0 %v1791
  %2578 = vmatprep.subr.bf16.mxu0 %v1794
  %2579 = vmatpush1.bf16.msra.mxu0 %v1793
  %2580 = vmatprep.subr.bf16.mxu0 %v1796
  %2581 = vmatpush1.bf16.msra.mxu0 %v1795
  %2582 = vmatprep.subr.bf16.mxu0 %v1798
  %2583 = vmatpush1.bf16.msra.mxu0 %v1797
  %2584 = vmatprep.subr.bf16.mxu0 %v1800
  %2585 = vmatpush1.bf16.msra.mxu0 %v1799
  %2586 = vmatprep.subr.bf16.mxu0 %v1802
  %2587 = vmatpush1.bf16.msra.mxu0 %v1801
  %2588 = vmatprep.mubr.bf16.mxu0 %v68
  %2589 = vmatmul.mubr.bf16.gmra.mrb[0].mxu0 %v67
  %v2590 = vpop.f32.mrb[0].mxu0
  %v2591 = vadd.f32 %v2550, %v2590
  %v2592 = vpop.f32.mrb[0].mxu0
  %v2593 = vadd.f32 %v2552, %v2592
  %v2594 = vpop.f32.mrb[0].mxu0
  %v2595 = vpop.f32.mrb[0].mxu0
  %2596 = vdwg.mxu0
  %2597 = vmatprep.subr.bf16.mxu0 %v1804
  %2598 = vmatpush1.bf16.msra.mxu0 %v1803
  %2599 = vmatprep.subr.bf16.mxu0 %v1806
  %2600 = vmatpush1.bf16.msra.mxu0 %v1805
  %2601 = vmatprep.subr.bf16.mxu0 %v1808
  %2602 = vmatpush1.bf16.msra.mxu0 %v1807
  %2603 = vmatprep.subr.bf16.mxu0 %v1810
  %2604 = vmatpush1.bf16.msra.mxu0 %v1809
  %2605 = vmatprep.subr.bf16.mxu0 %v1812
  %2606 = vmatpush1.bf16.msra.mxu0 %v1811
  %2607 = vmatprep.subr.bf16.mxu0 %v1814
  %2608 = vmatpush1.bf16.msra.mxu0 %v1813
  %2609 = vmatprep.subr.bf16.mxu0 %v1816
  %2610 = vmatpush1.bf16.msra.mxu0 %v1815
  %2611 = vmatprep.subr.bf16.mxu0 %v1818
  %2612 = vmatpush1.bf16.msra.mxu0 %v1817
  %2613 = vmatprep.subr.bf16.mxu0 %v1820
  %2614 = vmatpush1.bf16.msra.mxu0 %v1819
  %2615 = vmatprep.subr.bf16.mxu0 %v1822
  %2616 = vmatpush1.bf16.msra.mxu0 %v1821
  %2617 = vmatprep.subr.bf16.mxu0 %v1824
  %2618 = vmatpush1.bf16.msra.mxu0 %v1823
  %2619 = vmatprep.subr.bf16.mxu0 %v1826
  %2620 = vmatpush1.bf16.msra.mxu0 %v1825
  %2621 = vmatprep.subr.bf16.mxu0 %v1828
  %2622 = vmatpush1.bf16.msra.mxu0 %v1827
  %2623 = vmatprep.subr.bf16.mxu0 %v1830
  %2624 = vmatpush1.bf16.msra.mxu0 %v1829
  %2625 = vmatprep.subr.bf16.mxu0 %v1832
  %2626 = vmatpush1.bf16.msra.mxu0 %v1831
  %2627 = vmatprep.subr.bf16.mxu0 0
  %2628 = vmatpush1.bf16.msra.mxu0 0
  %2629 = vmatprep.mubr.bf16.mxu0 %v2185
  %2630 = vmatmul.mubr.bf16.gmra.mrb[0].mxu0 %v69
  %v2631 = vpop.f32.mrb[0].mxu0
  %v2632 = vadd.f32 %v2591, %v2631
  %v2633 = vpop.f32.mrb[0].mxu0
  %v2634 = vadd.f32 %v2593, %v2633
  %v2635 = vpop.f32.mrb[0].mxu0
  %v2636 = vpop.f32.mrb[0].mxu0
  %2637 = vdwg.mxu0
  %v2638 = vmax.f32 %v2632, 0.0
  %v2639 = vmax.f32 %v2634, 0.0
  %v2640 = vpack.c.bf16 %v2638, %v2638
  %v2641 = vpack.c.bf16 %v2639, %v2639
  %v2642 = vld [vmem:[%s3] sm:$0xf]
  %v2643 = vld [vmem:[%s3 + $0x4] sm:$0xf]
  %v2644 = vld [vmem:[%s3 + $0x8] sm:$0xf]
  %v2645 = vld [vmem:[%s3 + $0xc] sm:$0xf]
  %v2646 = vld [vmem:[%s3 + $0x10] sm:$0xf]
  %v2647 = vld [vmem:[%s3 + $0x14] sm:$0xf]
  %v2648 = vld [vmem:[%s3 + $0x18] sm:$0xf]
  %v2649 = vld [vmem:[%s3 + $0x1c] sm:$0xf]
  %v2650 = vld [vmem:[%s3 + $0x20] sm:$0xf]
  %v2651 = vld [vmem:[%s3 + $0x24] sm:$0xf]
  %v2652 = vld [vmem:[%s3 + $0x28] sm:$0xf]
  %v2653 = vld [vmem:[%s3 + $0x2c] sm:$0xf]
  %v2654 = vld [vmem:[%s3 + $0x30] sm:$0xf]
  %v2655 = vld [vmem:[%s3 + $0x34] sm:$0xf]
  %v2656 = vld [vmem:[%s3 + $0x38] sm:$0xf]
  %v2657 = vld [vmem:[%s3 + $0x3c] sm:$0xf]
  %v2658 = vld [vmem:[%s3 + $0x40] sm:$0xf]
  %v2659 = vld [vmem:[%s3 + $0x44] sm:$0xf]
  %v2660 = vld [vmem:[%s3 + $0x48] sm:$0xf]
  %v2661 = vld [vmem:[%s3 + $0x4c] sm:$0xf]
  %v2662 = vld [vmem:[%s3 + $0x50] sm:$0xf]
  %v2663 = vld [vmem:[%s3 + $0x54] sm:$0xf]
  %v2664 = vld [vmem:[%s3 + $0x58] sm:$0xf]
  %v2665 = vld [vmem:[%s3 + $0x5c] sm:$0xf]
  %v2666 = vld [vmem:[%s3 + $0x60] sm:$0xf]
  %v2667 = vld [vmem:[%s3 + $0x64] sm:$0xf]
  %v2668 = vld [vmem:[%s3 + $0x68] sm:$0xf]
  %v2669 = vld [vmem:[%s3 + $0x6c] sm:$0xf]
  %v2670 = vld [vmem:[%s3 + $0x70] sm:$0xf]
  %v2671 = vld [vmem:[%s3 + $0x74] sm:$0xf]
  %v2672 = vld [vmem:[%s3 + $0x78] sm:$0xf]
  %v2673 = vld [vmem:[%s3 + $0x7c] sm:$0xf]
  %v2674 = vld [vmem:[%s4] sm:$0x1]
  %v2676 = vlaneseq
  %v2677 = vshrl.u32 %v2676, 7
  %v2678 = vsub.s32 0, %v2677
  %v2679 = vrot.slane %v2674, %v2678
  %v2713 = vunpack.c.l.b16 %v2642
  %v2714 = vunpack.c.l.b16 %v2643
  %v2715 = vunpack.c.l.b16 %v2644
  %v2716 = vunpack.c.l.b16 %v2645
  %v2717 = vunpack.c.l.b16 %v2646
  %v2718 = vunpack.c.l.b16 %v2647
  %v2719 = vunpack.c.l.b16 %v2648
  %v2720 = vunpack.c.l.b16 %v2649
  %v2721 = vunpack.c.l.b16 %v2650
  %v2722 = vunpack.c.l.b16 %v2651
  %v2723 = vunpack.c.l.b16 %v2652
  %v2724 = vunpack.c.l.b16 %v2653
  %v2725 = vunpack.c.l.b16 %v2654
  %v2726 = vunpack.c.l.b16 %v2655
  %v2727 = vunpack.c.l.b16 %v2656
  %v2728 = vunpack.c.l.b16 %v2657
  %v2729 = vunpack.c.l.b16 %v2658
  %v2730 = vunpack.c.l.b16 %v2659
  %v2731 = vunpack.c.l.b16 %v2660
  %v2732 = vunpack.c.l.b16 %v2661
  %v2733 = vunpack.c.l.b16 %v2662
  %v2734 = vunpack.c.l.b16 %v2663
  %v2735 = vunpack.c.l.b16 %v2664
  %v2736 = vunpack.c.l.b16 %v2665
  %v2737 = vunpack.c.l.b16 %v2666
  %v2738 = vunpack.c.l.b16 %v2667
  %v2739 = vunpack.c.l.b16 %v2668
  %v2740 = vunpack.c.l.b16 %v2669
  %v2741 = vunpack.c.l.b16 %v2670
  %v2742 = vunpack.c.l.b16 %v2671
  %v2743 = vunpack.c.l.b16 %v2672
  %v2744 = vunpack.c.l.b16 %v2673
  %v2745 = vpack.c.b16 %v2714, %v2713
  %v2746 = vpack.c.b16 %v2716, %v2715
  %v2747 = vpack.c.b16 %v2718, %v2717
  %v2748 = vpack.c.b16 %v2720, %v2719
  %v2749 = vpack.c.b16 %v2722, %v2721
  %v2750 = vpack.c.b16 %v2724, %v2723
  %v2751 = vpack.c.b16 %v2726, %v2725
  %v2752 = vpack.c.b16 %v2728, %v2727
  %v2753 = vpack.c.b16 %v2730, %v2729
  %v2754 = vpack.c.b16 %v2732, %v2731
  %v2755 = vpack.c.b16 %v2734, %v2733
  %v2756 = vpack.c.b16 %v2736, %v2735
  %v2757 = vpack.c.b16 %v2738, %v2737
  %v2758 = vpack.c.b16 %v2740, %v2739
  %v2759 = vpack.c.b16 %v2742, %v2741
  %v2760 = vpack.c.b16 %v2744, %v2743
  %2777 = vmatprep.subr.bf16.mxu0 0
  %2778 = vmatpush1.bf16.msra.mxu0 %v2745
  %2779 = vmatprep.subr.bf16.mxu0 0
  %2780 = vmatpush1.bf16.msra.mxu0 %v2746
  %2781 = vmatprep.subr.bf16.mxu0 0
  %2782 = vmatpush1.bf16.msra.mxu0 %v2747
  %2783 = vmatprep.subr.bf16.mxu0 0
  %2784 = vmatpush1.bf16.msra.mxu0 %v2748
  %2785 = vmatprep.subr.bf16.mxu0 0
  %2786 = vmatpush1.bf16.msra.mxu0 %v2749
  %2787 = vmatprep.subr.bf16.mxu0 0
  %2788 = vmatpush1.bf16.msra.mxu0 %v2750
  %2789 = vmatprep.subr.bf16.mxu0 0
  %2790 = vmatpush1.bf16.msra.mxu0 %v2751
  %2791 = vmatprep.subr.bf16.mxu0 0
  %2792 = vmatpush1.bf16.msra.mxu0 %v2752
  %2793 = vmatprep.subr.bf16.mxu0 0
  %2794 = vmatpush1.bf16.msra.mxu0 %v2753
  %2795 = vmatprep.subr.bf16.mxu0 0
  %2796 = vmatpush1.bf16.msra.mxu0 %v2754
  %2797 = vmatprep.subr.bf16.mxu0 0
  %2798 = vmatpush1.bf16.msra.mxu0 %v2755
  %2799 = vmatprep.subr.bf16.mxu0 0
  %2800 = vmatpush1.bf16.msra.mxu0 %v2756
  %2801 = vmatprep.subr.bf16.mxu0 0
  %2802 = vmatpush1.bf16.msra.mxu0 %v2757
  %2803 = vmatprep.subr.bf16.mxu0 0
  %2804 = vmatpush1.bf16.msra.mxu0 %v2758
  %2805 = vmatprep.subr.bf16.mxu0 0
  %2806 = vmatpush1.bf16.msra.mxu0 %v2759
  %2807 = vmatprep.subr.bf16.mxu0 0
  %2808 = vmatpush1.bf16.msra.mxu0 %v2760
  %2809 = vmatprep.mubr.bf16.mxu0 %v2641
  %2810 = vmatmul.mubr.bf16.gmra.mrb[0].mxu0 %v2640
  %v2811 = vpop.f32.mrb[0].mxu0
  %v2812 = vadd.f32 %v2679, %v2811
  %v2813 = vpop.f32.mrb[0].mxu0
  %v2814 = vpop.f32.mrb[0].mxu0
  %v2815 = vpop.f32.mrb[0].mxu0
  %2816 = vdwg.mxu0
  %v2817 = vmax.f32 %v2812, 0.0
  %v2818 = vpack.c.bf16 %v2817, %v2817
  %v2819 = vld [vmem:[%s5] sm:$0xf]
  %v2820 = vld [vmem:[%s5 + $0x4] sm:$0xf]
  %v2821 = vld [vmem:[%s5 + $0x8] sm:$0xf]
  %v2822 = vld [vmem:[%s5 + $0xc] sm:$0xf]
  %v2823 = vld [vmem:[%s5 + $0x10] sm:$0xf]
  %v2824 = vld [vmem:[%s5 + $0x14] sm:$0xf]
  %v2825 = vld [vmem:[%s5 + $0x18] sm:$0xf]
  %v2826 = vld [vmem:[%s5 + $0x1c] sm:$0xf]
  %v2827 = vld [vmem:[%s5 + $0x20] sm:$0xf]
  %v2828 = vld [vmem:[%s5 + $0x24] sm:$0xf]
  %v2829 = vld [vmem:[%s5 + $0x28] sm:$0xf]
  %v2830 = vld [vmem:[%s5 + $0x2c] sm:$0xf]
  %v2831 = vld [vmem:[%s5 + $0x30] sm:$0xf]
  %v2832 = vld [vmem:[%s5 + $0x34] sm:$0xf]
  %v2833 = vld [vmem:[%s5 + $0x38] sm:$0xf]
  %v2834 = vld [vmem:[%s5 + $0x3c] sm:$0xf]
  %v2835 = vld [vmem:[%s6] sm:$0x1]
  %v2837 = vlaneseq
  %v2838 = vshrl.u32 %v2837, 7
  %v2839 = vsub.s32 0, %v2838
  %v2840 = vrot.slane %v2835, %v2839
  %v2858 = vunpack.c.l.b16 %v2819
  %v2859 = vunpack.c.l.b16 %v2820
  %v2860 = vunpack.c.l.b16 %v2821
  %v2861 = vunpack.c.l.b16 %v2822
  %v2862 = vunpack.c.l.b16 %v2823
  %v2863 = vunpack.c.l.b16 %v2824
  %v2864 = vunpack.c.l.b16 %v2825
  %v2865 = vunpack.c.l.b16 %v2826
  %v2866 = vunpack.c.l.b16 %v2827
  %v2867 = vunpack.c.l.b16 %v2828
  %v2868 = vunpack.c.l.b16 %v2829
  %v2869 = vunpack.c.l.b16 %v2830
  %v2870 = vunpack.c.l.b16 %v2831
  %v2871 = vunpack.c.l.b16 %v2832
  %v2872 = vunpack.c.l.b16 %v2833
  %v2873 = vunpack.c.l.b16 %v2834
  %v2874 = vpack.c.b16 %v2859, %v2858
  %v2875 = vpack.c.b16 %v2861, %v2860
  %v2876 = vpack.c.b16 %v2863, %v2862
  %v2877 = vpack.c.b16 %v2865, %v2864
  %v2878 = vpack.c.b16 %v2867, %v2866
  %v2879 = vpack.c.b16 %v2869, %v2868
  %v2880 = vpack.c.b16 %v2871, %v2870
  %v2881 = vpack.c.b16 %v2873, %v2872
  %2890 = vmatprep.subr.bf16.mxu0 0
  %2891 = vmatpush1.bf16.msra.mxu0 %v2874
  %2892 = vmatprep.subr.bf16.mxu0 0
  %2893 = vmatpush1.bf16.msra.mxu0 %v2875
  %2894 = vmatprep.subr.bf16.mxu0 0
  %2895 = vmatpush1.bf16.msra.mxu0 %v2876
  %2896 = vmatprep.subr.bf16.mxu0 0
  %2897 = vmatpush1.bf16.msra.mxu0 %v2877
  %2898 = vmatprep.subr.bf16.mxu0 0
  %2899 = vmatpush1.bf16.msra.mxu0 %v2878
  %2900 = vmatprep.subr.bf16.mxu0 0
  %2901 = vmatpush1.bf16.msra.mxu0 %v2879
  %2902 = vmatprep.subr.bf16.mxu0 0
  %2903 = vmatpush1.bf16.msra.mxu0 %v2880
  %2904 = vmatprep.subr.bf16.mxu0 0
  %2905 = vmatpush1.bf16.msra.mxu0 %v2881
  %2906 = vmatprep.subr.bf16.mxu0 0
  %2907 = vmatpush1.bf16.msra.mxu0 0
  %2908 = vmatprep.subr.bf16.mxu0 0
  %2909 = vmatpush1.bf16.msra.mxu0 0
  %2910 = vmatprep.subr.bf16.mxu0 0
  %2911 = vmatpush1.bf16.msra.mxu0 0
  %2912 = vmatprep.subr.bf16.mxu0 0
  %2913 = vmatpush1.bf16.msra.mxu0 0
  %2914 = vmatprep.subr.bf16.mxu0 0
  %2915 = vmatpush1.bf16.msra.mxu0 0
  %2916 = vmatprep.subr.bf16.mxu0 0
  %2917 = vmatpush1.bf16.msra.mxu0 0
  %2918 = vmatprep.subr.bf16.mxu0 0
  %2919 = vmatpush1.bf16.msra.mxu0 0
  %2920 = vmatprep.subr.bf16.mxu0 0
  %2921 = vmatpush1.bf16.msra.mxu0 0
  %2922 = vmatprep.mubr.bf16.mxu0 0
  %2923 = vmatmul.mubr.bf16.gmra.mrb[0].mxu0 %v2818
  %v2924 = vpop.f32.mrb[0].mxu0
  %v2925 = vadd.f32 %v2840, %v2924
  %v2926 = vpop.f32.mrb[0].mxu0
  %v2927 = vpop.f32.mrb[0].mxu0
  %v2928 = vpop.f32.mrb[0].mxu0
  %2929 = vdwg.mxu0
  %v2930 = vpack.c.bf16 %v2925, %v2925
  %2931 = vst [vmem:[%s7] sm:$0xf] %v2930
  // Predicated region
  $region30: #{_lambda_.1} parent=0 // pred_check
    _
  $region31: #{_lambda_.1} parent=0 // pred_check_branch
    %2933 = sbr.rel (0) target = $region33
  $region32: #{_lambda_.1} parent=0 // pred_region
    _
  $region33: #{_lambda_.1} parent=0 // pred_fallthru
    _
  // Predicated region
  $region34: #{_lambda_.1} parent=0 // pred_check
    _
  $region35: #{_lambda_.1} parent=0 // pred_check_branch
    %2935 = sbr.rel (0) target = $region37
  $region36: #{_lambda_.1} parent=0 // pred_region
    _
  $region37: #{_lambda_.1} parent=0 // pred_fallthru
    _

</llo_original>
